<compile_context>
chip_gen: v7x
topology: tpu7x:2x2x1
jax: 0.10.0
libtpu: 0.0.40
codegen_flags: <defaults>
</compile_context>

<pallas_src>
import functools

import jax
import jax.numpy as jnp
from jax.experimental import pallas as pl
from jax.experimental.pallas import tpu as pltpu


# ---------------------------------------------------------------------------
# Pass 1: reduction over sequence tiles.
#   k = relu(x @ Wk + bk + pos),  v = x @ Wv + bv
#   ksum += sum_n k ;  kv += K^T V        (both resident f32 accumulators)
# ---------------------------------------------------------------------------
def _phase1_kernel(x_ref, wkv_ref, bkv_ref, pos_ref, ksum_ref, kv_ref, *, C):
    t = pl.program_id(1)

    @pl.when(t == 0)
    def _():
        ksum_ref[...] = jnp.zeros_like(ksum_ref)
        kv_ref[...] = jnp.zeros_like(kv_ref)

    x = x_ref[0]                                                      # (T, C) bf16
    kvp = jnp.dot(x, wkv_ref[...],
                  preferred_element_type=jnp.float32) + bkv_ref[...]  # (T, 2C) f32
    k = jnp.maximum(kvp[:, :C] + pos_ref[...], 0.0)                   # (T, C) f32
    v = kvp[:, C:]                                                    # (T, C) f32

    # epsilon-sensitive ksum accumulation stays f32 (VPU reduce).
    ksum_ref[0] += jnp.sum(k, axis=0, keepdims=True)

    # K^T V without materializing a transpose: contract axis 0 of both operands.
    # Perf-review note: verify with pl.lower_as_mlir that no vxpose of the
    # (T, C) k tile is inserted; restructure to an explicit transposed-operand
    # form if it is.
    kv_ref[0] += jax.lax.dot_general(
        k.astype(jnp.bfloat16), v.astype(jnp.bfloat16),
        dimension_numbers=(((0,), (0,)), ((), ())),
        preferred_element_type=jnp.float32)


# ---------------------------------------------------------------------------
# Pass 2: per query tile — fused q/v matmul, fused zden/attn matmul,
# depthwise conv from a VMEM-staged haloed v slab, projection.
# ---------------------------------------------------------------------------
def _phase2_kernel(x_ref, xprev_ref, xnext_ref, wqv_ref, bqv_ref, kvz_ref,
                   wdw_ref, bdw_ref, wproj_ref, bproj_ref, out_ref, vh_ref,
                   *, T, C, P, ksize):
    t = pl.program_id(1)
    nt = pl.num_programs(1)

    wqv = wqv_ref[...]                                                # (C, 2C) bf16
    bqv = bqv_ref[...]                                                # (1, 2C) f32

    # q = relu(x @ Wq + bq), v = x @ Wv + bv  — one fused (T,C)@(C,2C) matmul.
    qv = jnp.dot(x_ref[0], wqv, preferred_element_type=jnp.float32) + bqv
    q = jnp.maximum(qv[:, :C], 0.0)                                   # (T, C) f32
    v = qv[:, C:]                                                     # (T, C) f32

    # Fused z-denominator / attention-numerator matmul against the pre-masked
    # bf16 RHS  [diag(ksum)·mask | kv⊙mask]  built once per batch.
    res = jnp.dot(q.astype(jnp.bfloat16), kvz_ref[0],
                  preferred_element_type=jnp.float32)                 # (T, 2C) f32
    z = pl.reciprocal(res[:, :C] + 1e-6, approx=True)                 # f32, EUP
    attn = res[:, C:] * z                                             # (T, C) f32

    # Halo v rows for the conv: recompute from the 8-row x halo blocks via Wv,
    # zero-masked at the sequence edges.
    wv = wqv[:, C:]                                                   # (C, C) bf16
    bv = bqv[:, C:]                                                   # (1, C) f32
    prev_ok = (t > 0).astype(jnp.float32)
    next_ok = (t < nt - 1).astype(jnp.float32)
    vprev = (jnp.dot(xprev_ref[0], wv,
                     preferred_element_type=jnp.float32) + bv) * prev_ok   # (8, C)
    vnext = (jnp.dot(xnext_ref[0], wv,
                     preferred_element_type=jnp.float32) + bv) * next_ok   # (8, C)

    # Stage the haloed v slab in VMEM with 8-row-aligned stores; the ksize
    # shifted taps are then plain sublane-offset VMEM loads (no value-level
    # relayout copies from an unaligned concatenate).
    vh_ref[0:8, :] = vprev
    vh_ref[8:8 + T, :] = v
    vh_ref[8 + T:16 + T, :] = vnext

    fm = vh_ref[8 - P:8 - P + T, :] * wdw_ref[0:1, :]
    for dt in range(1, ksize):
        s = 8 - P + dt
        fm = fm + vh_ref[s:s + T, :] * wdw_ref[dt:dt + 1, :]

    xo = (attn + fm + bdw_ref[...]).astype(jnp.bfloat16)              # (T, C)
    out_ref[0] = (jnp.dot(xo, wproj_ref[...],
                          preferred_element_type=jnp.float32)
                  + bproj_ref[...]).astype(out_ref.dtype)


def slab_linear_attention(x, params, *, num_heads, kernel_size, seq_block=None,
                          single_buffer_weights=True, out_dtype=jnp.float32):
    B, N, C = x.shape
    assert C % num_heads == 0
    head_dim = C // num_heads
    P = kernel_size // 2
    assert P <= 8, "conv half-width must fit inside an 8-row halo block"
    assert N % 8 == 0, "sequence length must be a multiple of 8 (sublane tile)"
    f32, bf16 = jnp.float32, jnp.bfloat16

    # --- generation-aware VMEM budget and sequence-tile heuristic ------------
    try:
        kind = jax.devices()[0].device_kind.lower()
    except Exception:  # pragma: no cover
        kind = ""
    if "v7" in kind:
        vmem_cap = 32 * 1024 * 1024      # 64 MiB physical per TC -> conservative
    elif "v6" in kind:
        vmem_cap = 96 * 1024 * 1024      # 128 MiB physical
    elif "v5" in kind:
        vmem_cap = 64 * 1024 * 1024
    else:
        vmem_cap = 32 * 1024 * 1024

    if seq_block is None:
        # rough pass-2 bytes/row (x bf16 x2buf, out x2buf, vh scratch, misc)
        fixed = 12 * C * C               # resident weights + fused kv RHS
        per_row = 18 * C
        t_max = max(8, int((vmem_cap * 0.5 - fixed) // per_row))
        seq_block = N
        for cand in (2048, 1024, 512, 256, 128, 64, 32, 16, 8):
            if cand <= t_max and cand <= N and N % cand == 0:
                seq_block = cand
                break
    T = seq_block
    assert N % T == 0 and T % 8 == 0, "seq tile must divide N and be 8-aligned"
    NT = N // T
    T8 = T // 8
    N8 = N // 8

    # --- operand prep (dtype / split / tiling only; no hot-loop compute) -----
    x_bf = x.astype(bf16)
    wqkv, bqkv = params["wqkv"], params["bqkv"]
    wkv = wqkv[:, C:].astype(bf16)                                   # [Wk | Wv]
    bkv = bqkv[:, C:].astype(f32)
    wqv = jnp.concatenate([wqkv[:, :C], wqkv[:, 2 * C:]], axis=1).astype(bf16)
    bqv = jnp.concatenate([bqkv[:, :C], bqkv[:, 2 * C:]], axis=1).astype(f32)
    pos = params["pos"].astype(f32)
    wproj = params["wproj"].astype(bf16)
    bproj = params["bproj"].astype(f32)
    wdw = jnp.tile(params["wdw"], (1, num_heads)).astype(f32)        # (ksize, C)
    bdw = jnp.tile(params["bdw"], (1, num_heads)).astype(f32)        # (1, C)

    def wspec(shape, imap):
        """Constant-index-map weight spec; single-buffered when supported."""
        if single_buffer_weights:
            return pl.BlockSpec(shape, imap, pipeline_mode=pl.Buffered(1))
        return pl.BlockSpec(shape, imap)

    # --- pass 1: ksum and K^T V (resident f32 accumulators) ------------------
    ksum, kv = pl.pallas_call(
        functools.partial(_phase1_kernel, C=C),
        out_shape=(jax.ShapeDtypeStruct((B, 1, C), f32),
                   jax.ShapeDtypeStruct((B, C, C), f32)),
        grid_spec=pltpu.PrefetchScalarGridSpec(
            num_scalar_prefetch=0,
            grid=(B, NT),
            in_specs=[
                pl.BlockSpec((1, T, C), lambda b, t: (b, t, 0)),      # x
                wspec((C, 2 * C), lambda b, t: (0, 0)),               # [Wk|Wv]
                wspec((1, 2 * C), lambda b, t: (0, 0)),               # [bk|bv]
                wspec((1, C), lambda b, t: (0, 0)),                   # pos enc
            ],
            out_specs=[
                pl.BlockSpec((1, 1, C), lambda b, t: (b, 0, 0)),      # ksum (resident)
                pl.BlockSpec((1, C, C), lambda b, t: (b, 0, 0)),      # kv   (resident)
            ]),
        compiler_params=pltpu.CompilerParams(
            dimension_semantics=("parallel", "arbitrary"),
            vmem_limit_bytes=vmem_cap),
    )(x_bf, wkv, bkv, pos)

    # --- once-per-batch fusion (XLA, tiny): pre-masked bf16 RHS for pass 2 ---
    #   kvz = [ diag(ksum) @ mask | kv ⊙ mask ]   of shape (B, C, 2C)
    head_ids = jnp.arange(C, dtype=jnp.int32) // head_dim
    maskf = (head_ids[:, None] == head_ids[None, :]).astype(f32)      # (C, C)
    m_block = ksum[:, 0, :, None] * maskf[None]                       # (B, C, C)
    kvz = jnp.concatenate([m_block, kv * maskf[None]], axis=-1).astype(bf16)

    # --- pass 2: q/v, z, attention, conv, projection -------------------------
    nt8_last = N8 - 1
    out = pl.pallas_call(
        functools.partial(_phase2_kernel, T=T, C=C, P=P, ksize=kernel_size),
        out_shape=jax.ShapeDtypeStruct((B, N, C), out_dtype),
        grid_spec=pltpu.PrefetchScalarGridSpec(
            num_scalar_prefetch=0,
            grid=(B, NT),
            in_specs=[
                pl.BlockSpec((1, T, C), lambda b, t: (b, t, 0)),                 # x cur
                pl.BlockSpec((1, 8, C),
                             lambda b, t: (b, jnp.maximum(t * T8 - 1, 0), 0)),   # x prev 8
                pl.BlockSpec((1, 8, C),
                             lambda b, t: (b, jnp.minimum((t + 1) * T8,
                                                          nt8_last), 0)),        # x next 8
                wspec((C, 2 * C), lambda b, t: (0, 0)),                          # [Wq|Wv]
                wspec((1, 2 * C), lambda b, t: (0, 0)),                          # [bq|bv]
                wspec((1, C, 2 * C), lambda b, t: (b, 0, 0)),                    # fused kv RHS
                wspec((kernel_size, C), lambda b, t: (0, 0)),                    # dwc weight
                wspec((1, C), lambda b, t: (0, 0)),                              # dwc bias
                wspec((C, C), lambda b, t: (0, 0)),                              # Wproj
                wspec((1, C), lambda b, t: (0, 0)),                              # bproj
            ],
            out_specs=pl.BlockSpec((1, T, C), lambda b, t: (b, t, 0)),
            scratch_shapes=[pltpu.VMEM((T + 16, C), jnp.float32)],               # haloed v
        ),
        compiler_params=pltpu.CompilerParams(
            dimension_semantics=("parallel", "parallel"),
            vmem_limit_bytes=vmem_cap),
    )(x_bf, x_bf, x_bf, wqv, bqv, kvz, wdw, bdw, wproj, bproj)
    return out


def init_params(key, dim, num_heads, kernel_size):
    head_dim = dim // num_heads
    ks = jax.random.split(key, 8)
    scale = 0.1
    # PyTorch Linear weights are (out, in); we store the (in, out) transpose.
    wqkv = scale * jax.random.normal(ks[0], (dim, 3 * dim), jnp.float32)
    bqkv = scale * jax.random.normal(ks[1], (1, 3 * dim), jnp.float32)
    # nn.Parameter(torch.zeros(1, dim)) — initialised non-zero to exercise the add.
    pos = scale * jax.random.normal(ks[2], (1, dim), jnp.float32)
    # Conv2d(head_dim, head_dim, k, groups=head_dim): weight (head_dim, 1, k, k);
    # only the centre column contributes (input spatial width is 1).
    w_dwc_full = scale * jax.random.normal(
        ks[3], (head_dim, 1, kernel_size, kernel_size), jnp.float32)
    wdw = jnp.transpose(w_dwc_full[:, 0, :, kernel_size // 2])   # (k, head_dim)
    bdw = scale * jax.random.normal(ks[4], (1, head_dim), jnp.float32)
    wproj = scale * jax.random.normal(ks[5], (dim, dim), jnp.float32)
    bproj = scale * jax.random.normal(ks[6], (1, dim), jnp.float32)
    return dict(wqkv=wqkv, bqkv=bqkv, pos=pos, wdw=wdw, bdw=bdw,
                wproj=wproj, bproj=bproj)


def reference(x, params, *, num_heads, kernel_size):
    """Pure-JAX f32 re-implementation of the PyTorch forward (verification)."""
    B, N, C = x.shape
    c = C // num_heads
    qkv = x @ params["wqkv"] + params["bqkv"]
    q, k, v = qkv[..., :C], qkv[..., C:2 * C], qkv[..., 2 * C:]
    k = k + params["pos"]
    q, k = jax.nn.relu(q), jax.nn.relu(k)

    def split(t):  # 'b n (h c) -> (b h) n c'
        return t.reshape(B, N, num_heads, c).transpose(0, 2, 1, 3).reshape(
            B * num_heads, N, c)

    q, k, v = map(split, (q, k, v))
    z = 1.0 / (jnp.einsum('bic,bc->bi', q, k.sum(1)) + 1e-6)
    kv = jnp.einsum('bjc,bjd->bcd', k, v)
    out = jnp.einsum('bic,bcd,bi->bid', q, kv, z)

    P = kernel_size // 2
    vpad = jnp.pad(v, ((0, 0), (P, P), (0, 0)))
    fm = jnp.broadcast_to(params["bdw"][None], v.shape)
    for t in range(kernel_size):
        fm = fm + vpad[:, t:t + N, :] * params["wdw"][t][None, None, :]
    out = out + fm
    out = out.reshape(B, num_heads, N, c).transpose(0, 2, 1, 3).reshape(B, N, C)
    return out @ params["wproj"] + params["bproj"]


if __name__ == "__main__":
    num_heads, kernel_size = 4, 5
    key = jax.random.PRNGKey(0)
    kx1, kx2, kp = jax.random.split(key, 3)

    # Test 1: demo shape, single sequence tile.
    B, N, dim = 2, 8, 32
    x = jax.random.normal(kx1, (B, N, dim), jnp.float32)
    params = init_params(kp, dim, num_heads, kernel_size)
    ref = reference(x, params, num_heads=num_heads, kernel_size=kernel_size)

    # Prefer single-buffered constant weights (pl.Buffered(1)); fall back to
    # default double buffering if this jax/libtpu build rejects it.
    single_buffer = True
    try:
        out = jax.block_until_ready(
            slab_linear_attention(x, params, num_heads=num_heads,
                                  kernel_size=kernel_size,
                                  single_buffer_weights=True))
        assert out.shape == (B, N, dim)
        assert jnp.allclose(out, ref, atol=3e-2, rtol=3e-2)
    except Exception:
        single_buffer = False
        out = jax.block_until_ready(
            slab_linear_attention(x, params, num_heads=num_heads,
                                  kernel_size=kernel_size,
                                  single_buffer_weights=False))
        assert out.shape == (B, N, dim)
        err = float(jnp.max(jnp.abs(out - ref)))
        # bf16 MXU operands (f32 accumulation) -> bf16-level tolerance vs f32 ref.
        assert jnp.allclose(out, ref, atol=3e-2, rtol=3e-2), f"max abs err {err}"

    # Test 2: multi-tile sequence (two-pass reduction + 8-row conv halos).
    N2 = 64
    x2 = jax.random.normal(kx2, (B, N2, dim), jnp.float32)
    out2 = jax.block_until_ready(
        slab_linear_attention(x2, params, num_heads=num_heads,
                              kernel_size=kernel_size, seq_block=32,
                              single_buffer_weights=single_buffer))
    ref2 = reference(x2, params, num_heads=num_heads, kernel_size=kernel_size)
    err2 = float(jnp.max(jnp.abs(out2 - ref2)))
    assert jnp.allclose(out2, ref2, atol=3e-2, rtol=3e-2), f"max abs err {err2}"

    print("KERNEL_OK")
</pallas_src>

<mosaic_0001>
module attributes {stable_mosaic.version = 11 : i64} {
  func.func @_phase1_kernel(%arg0: i32, %arg1: i32, %arg2: memref<1x8x32xbf16, #tpu.memory_space<vmem>>, %arg3: memref<32x64xbf16, #tpu.memory_space<vmem>>, %arg4: memref<1x64xf32, #tpu.memory_space<vmem>>, %arg5: memref<1x32xf32, #tpu.memory_space<vmem>>, %arg6: memref<1x1x32xf32, #tpu.memory_space<vmem>>, %arg7: memref<1x32x32xf32, #tpu.memory_space<vmem>>) attributes {dimension_semantics = [#tpu.dimension_semantics<parallel>, #tpu.dimension_semantics<arbitrary>], iteration_bounds = array<i64: 2, 1>, scalar_prefetch = 0 : i64, scratch_operands = 0 : i64, tpu.core_type = #tpu.core_type<tc>, window_params = [{transform_indices = @transform_0, window_bounds = array<i64: 1, 8, 32>}, {pipeline_mode = #tpu.pipeline_mode<synchronous>, transform_indices = @transform_1, window_bounds = array<i64: 32, 64>}, {pipeline_mode = #tpu.pipeline_mode<synchronous>, transform_indices = @transform_2, window_bounds = array<i64: 1, 64>}, {pipeline_mode = #tpu.pipeline_mode<synchronous>, transform_indices = @transform_3, window_bounds = array<i64: 1, 32>}, {transform_indices = @transform_4, window_bounds = array<i64: 1, 1, 32>}, {transform_indices = @transform_5, window_bounds = array<i64: 1, 32, 32>}]} {
    %c0_i32 = arith.constant 0 : i32
    %0 = arith.cmpi eq, %arg1, %c0_i32 : i32
    %1 = arith.extui %0 : i1 to i32
    %c0_i32_0 = arith.constant 0 : i32
    %2 = arith.cmpi ne, %1, %c0_i32_0 : i32
    scf.if %2 {
      %cst_24 = arith.constant 0.000000e+00 : f32
      %34 = vector.broadcast %cst_24 : f32 to vector<1x1x32xf32>
      %c0_25 = arith.constant 0 : index
      %c0_26 = arith.constant 0 : index
      %c0_27 = arith.constant 0 : index
      %35 = vector.load %arg6[%c0_25, %c0_26, %c0_27] : memref<1x1x32xf32, #tpu.memory_space<vmem>>, vector<1x1x32xf32>
      tpu.vector_store %arg6[%c0_25, %c0_26, %c0_27], %34 {strides = array<i32>} : memref<1x1x32xf32, #tpu.memory_space<vmem>>, vector<1x1x32xf32>,
      %cst_28 = arith.constant 0.000000e+00 : f32
      %36 = vector.broadcast %cst_28 : f32 to vector<1x32x32xf32>
      %c0_29 = arith.constant 0 : index
      %c0_30 = arith.constant 0 : index
      %c0_31 = arith.constant 0 : index
      %37 = vector.load %arg7[%c0_29, %c0_30, %c0_31] : memref<1x32x32xf32, #tpu.memory_space<vmem>>, vector<1x32x32xf32>
      tpu.vector_store %arg7[%c0_29, %c0_30, %c0_31], %36 {strides = array<i32>} : memref<1x32x32xf32, #tpu.memory_space<vmem>>, vector<1x32x32xf32>,
    } else {
    }
    %c0 = arith.constant 0 : index
    %c0_1 = arith.constant 0 : index
    %c0_2 = arith.constant 0 : index
    %3 = vector.load %arg2[%c0, %c0_1, %c0_2] : memref<1x8x32xbf16, #tpu.memory_space<vmem>>, vector<1x8x32xbf16>
    %4 = vector.shape_cast %3 : vector<1x8x32xbf16> to vector<8x32xbf16>
    %c0_3 = arith.constant 0 : index
    %c0_4 = arith.constant 0 : index
    %5 = vector.load %arg3[%c0_3, %c0_4] : memref<32x64xbf16, #tpu.memory_space<vmem>>, vector<32x64xbf16>
    %cst = arith.constant dense<0.000000e+00> : vector<8x64xf32>
    %6 = tpu.matmul %4, %5, %cst {dimension_numbers = #tpu.dot_dimension_numbers<[1], [0], [0], [1], [0, 0, 1, 1], [], []>} : vector<8x32xbf16>, vector<32x64xbf16>, vector<8x64xf32> -> vector<8x64xf32>
    %c0_5 = arith.constant 0 : index
    %c0_6 = arith.constant 0 : index
    %7 = vector.load %arg4[%c0_5, %c0_6] : memref<1x64xf32, #tpu.memory_space<vmem>>, vector<1x64xf32>
    %8 = vector.broadcast %7 : vector<1x64xf32> to vector<8x64xf32>
    %9 = arith.addf %6, %8 : vector<8x64xf32>
    %10 = vector.extract_strided_slice %9 {offsets = [0, 0], sizes = [8, 32], strides = [1, 1]} : vector<8x64xf32> to vector<8x32xf32>
    %c0_7 = arith.constant 0 : index
    %c0_8 = arith.constant 0 : index
    %11 = vector.load %arg5[%c0_7, %c0_8] : memref<1x32xf32, #tpu.memory_space<vmem>>, vector<1x32xf32>
    %12 = vector.broadcast %11 : vector<1x32xf32> to vector<8x32xf32>
    %13 = arith.addf %10, %12 : vector<8x32xf32>
    %cst_9 = arith.constant 0.000000e+00 : f32
    %14 = vector.broadcast %cst_9 : f32 to vector<8x32xf32>
    %15 = arith.maximumf %13, %14 : vector<8x32xf32>
    %16 = vector.extract_strided_slice %9 {offsets = [0, 32], sizes = [8, 32], strides = [1, 1]} : vector<8x64xf32> to vector<8x32xf32>
    %c0_10 = arith.constant 0 : index
    %c0_11 = arith.constant 0 : index
    %c0_12 = arith.constant 0 : index
    %17 = vector.load %arg6[%c0_10, %c0_11, %c0_12] : memref<1x1x32xf32, #tpu.memory_space<vmem>>, vector<1x1x32xf32>
    %18 = vector.shape_cast %17 : vector<1x1x32xf32> to vector<1x32xf32>
    %cst_13 = arith.constant dense<0.000000e+00> : vector<32xf32>
    %19 = vector.multi_reduction <add>, %15, %cst_13 [0] : vector<8x32xf32> to vector<32xf32>
    %20 = vector.shape_cast %19 : vector<32xf32> to vector<1x32xf32>
    %21 = arith.addf %18, %20 : vector<1x32xf32>
    %c0_14 = arith.constant 0 : index
    %c0_15 = arith.constant 0 : index
    %c0_16 = arith.constant 0 : index
    %22 = vector.load %arg6[%c0_14, %c0_15, %c0_16] : memref<1x1x32xf32, #tpu.memory_space<vmem>>, vector<1x1x32xf32>
    %23 = vector.shape_cast %22 : vector<1x1x32xf32> to vector<1x32xf32>
    %24 = vector.shape_cast %21 : vector<1x32xf32> to vector<1x1x32xf32>
    tpu.vector_store %arg6[%c0_14, %c0_15, %c0_16], %24 {strides = array<i32>} : memref<1x1x32xf32, #tpu.memory_space<vmem>>, vector<1x1x32xf32>,
    %c0_17 = arith.constant 0 : index
    %c0_18 = arith.constant 0 : index
    %c0_19 = arith.constant 0 : index
    %25 = vector.load %arg7[%c0_17, %c0_18, %c0_19] : memref<1x32x32xf32, #tpu.memory_space<vmem>>, vector<1x32x32xf32>
    %26 = vector.shape_cast %25 : vector<1x32x32xf32> to vector<32x32xf32>
    %27 = arith.truncf %15 : vector<8x32xf32> to vector<8x32xbf16>
    %28 = arith.truncf %16 : vector<8x32xf32> to vector<8x32xbf16>
    %cst_20 = arith.constant dense<0.000000e+00> : vector<32x32xf32>
    %29 = tpu.matmul %27, %28, %cst_20 {dimension_numbers = #tpu.dot_dimension_numbers<[0], [0], [1], [1], [0, 1, 1, 1], [], []>} : vector<8x32xbf16>, vector<8x32xbf16>, vector<32x32xf32> -> vector<32x32xf32>
    %30 = arith.addf %26, %29 : vector<32x32xf32>
    %c0_21 = arith.constant 0 : index
    %c0_22 = arith.constant 0 : index
    %c0_23 = arith.constant 0 : index
    %31 = vector.load %arg7[%c0_21, %c0_22, %c0_23] : memref<1x32x32xf32, #tpu.memory_space<vmem>>, vector<1x32x32xf32>
    %32 = vector.shape_cast %31 : vector<1x32x32xf32> to vector<32x32xf32>
    %33 = vector.shape_cast %30 : vector<32x32xf32> to vector<1x32x32xf32>
    tpu.vector_store %arg7[%c0_21, %c0_22, %c0_23], %33 {strides = array<i32>} : memref<1x32x32xf32, #tpu.memory_space<vmem>>, vector<1x32x32xf32>,
    return
  }
  func.func @transform_0(%arg0: i32, %arg1: i32) -> (i32, i32, i32) {
    %c0_i32 = arith.constant 0 : i32
    %c0_i32_0 = arith.constant 0 : i32
    return %arg0, %arg1, %c0_i32 : i32, i32, i32
  }
  func.func @transform_1(%arg0: i32, %arg1: i32) -> (i32, i32) {
    %c0_i32 = arith.constant 0 : i32
    %c0_i32_0 = arith.constant 0 : i32
    %c0_i32_1 = arith.constant 0 : i32
    return %c0_i32, %c0_i32_0 : i32, i32
  }
  func.func @transform_2(%arg0: i32, %arg1: i32) -> (i32, i32) {
    %c0_i32 = arith.constant 0 : i32
    %c0_i32_0 = arith.constant 0 : i32
    %c0_i32_1 = arith.constant 0 : i32
    return %c0_i32, %c0_i32_0 : i32, i32
  }
  func.func @transform_3(%arg0: i32, %arg1: i32) -> (i32, i32) {
    %c0_i32 = arith.constant 0 : i32
    %c0_i32_0 = arith.constant 0 : i32
    %c0_i32_1 = arith.constant 0 : i32
    return %c0_i32, %c0_i32_0 : i32, i32
  }
  func.func @transform_4(%arg0: i32, %arg1: i32) -> (i32, i32, i32) {
    %c0_i32 = arith.constant 0 : i32
    %c0_i32_0 = arith.constant 0 : i32
    %c0_i32_1 = arith.constant 0 : i32
    return %arg0, %c0_i32, %c0_i32_0 : i32, i32, i32
  }
  func.func @transform_5(%arg0: i32, %arg1: i32) -> (i32, i32, i32) {
    %c0_i32 = arith.constant 0 : i32
    %c0_i32_0 = arith.constant 0 : i32
    %c0_i32_1 = arith.constant 0 : i32
    return %arg0, %c0_i32, %c0_i32_0 : i32, i32, i32
  }
}

module attributes {stable_mosaic.version = 11 : i64} {
  func.func @_phase1_kernel(%arg0: i32, %arg1: i32, %arg2: memref<1x8x32xbf16, #tpu.memory_space<vmem>>, %arg3: memref<32x64xbf16, #tpu.memory_space<vmem>>, %arg4: memref<1x64xf32, #tpu.memory_space<vmem>>, %arg5: memref<1x32xf32, #tpu.memory_space<vmem>>, %arg6: memref<1x1x32xf32, #tpu.memory_space<vmem>>, %arg7: memref<1x32x32xf32, #tpu.memory_space<vmem>>) attributes {dimension_semantics = [#tpu.dimension_semantics<parallel>, #tpu.dimension_semantics<arbitrary>], iteration_bounds = array<i64: 2, 1>, scalar_prefetch = 0 : i64, scratch_operands = 0 : i64, tpu.core_type = #tpu.core_type<tc>, window_params = [{transform_indices = @transform_0, window_bounds = array<i64: 1, 8, 32>}, {pipeline_mode = #tpu.pipeline_mode<synchronous>, transform_indices = @transform_1, window_bounds = array<i64: 32, 64>}, {pipeline_mode = #tpu.pipeline_mode<synchronous>, transform_indices = @transform_2, window_bounds = array<i64: 1, 64>}, {pipeline_mode = #tpu.pipeline_mode<synchronous>, transform_indices = @transform_3, window_bounds = array<i64: 1, 32>}, {transform_indices = @transform_4, window_bounds = array<i64: 1, 1, 32>}, {transform_indices = @transform_5, window_bounds = array<i64: 1, 32, 32>}]} {
    %c0_i32 = arith.constant 0 : i32
    %0 = arith.cmpi eq, %arg1, %c0_i32 : i32
    %1 = arith.extui %0 : i1 to i32
    %c0_i32_0 = arith.constant 0 : i32
    %2 = arith.cmpi ne, %1, %c0_i32_0 : i32
    scf.if %2 {
      %cst_24 = arith.constant 0.000000e+00 : f32
      %34 = vector.broadcast %cst_24 : f32 to vector<1x1x32xf32>
      %c0_25 = arith.constant 0 : index
      %c0_26 = arith.constant 0 : index
      %c0_27 = arith.constant 0 : index
      %35 = vector.load %arg6[%c0_25, %c0_26, %c0_27] : memref<1x1x32xf32, #tpu.memory_space<vmem>>, vector<1x1x32xf32>
      tpu.vector_store %arg6[%c0_25, %c0_26, %c0_27], %34 {strides = array<i32>} : memref<1x1x32xf32, #tpu.memory_space<vmem>>, vector<1x1x32xf32>,
      %cst_28 = arith.constant 0.000000e+00 : f32
      %36 = vector.broadcast %cst_28 : f32 to vector<1x32x32xf32>
      %c0_29 = arith.constant 0 : index
      %c0_30 = arith.constant 0 : index
      %c0_31 = arith.constant 0 : index
      %37 = vector.load %arg7[%c0_29, %c0_30, %c0_31] : memref<1x32x32xf32, #tpu.memory_space<vmem>>, vector<1x32x32xf32>
      tpu.vector_store %arg7[%c0_29, %c0_30, %c0_31], %36 {strides = array<i32>} : memref<1x32x32xf32, #tpu.memory_space<vmem>>, vector<1x32x32xf32>,
    } else {
    }
    %c0 = arith.constant 0 : index
    %c0_1 = arith.constant 0 : index
    %c0_2 = arith.constant 0 : index
    %3 = vector.load %arg2[%c0, %c0_1, %c0_2] : memref<1x8x32xbf16, #tpu.memory_space<vmem>>, vector<1x8x32xbf16>
    %4 = vector.shape_cast %3 : vector<1x8x32xbf16> to vector<8x32xbf16>
    %c0_3 = arith.constant 0 : index
    %c0_4 = arith.constant 0 : index
    %5 = vector.load %arg3[%c0_3, %c0_4] : memref<32x64xbf16, #tpu.memory_space<vmem>>, vector<32x64xbf16>
    %cst = arith.constant dense<0.000000e+00> : vector<8x64xf32>
    %6 = tpu.matmul %4, %5, %cst {dimension_numbers = #tpu.dot_dimension_numbers<[1], [0], [0], [1], [0, 0, 1, 1], [], []>} : vector<8x32xbf16>, vector<32x64xbf16>, vector<8x64xf32> -> vector<8x64xf32>
    %c0_5 = arith.constant 0 : index
    %c0_6 = arith.constant 0 : index
    %7 = vector.load %arg4[%c0_5, %c0_6] : memref<1x64xf32, #tpu.memory_space<vmem>>, vector<1x64xf32>
    %8 = vector.broadcast %7 : vector<1x64xf32> to vector<8x64xf32>
    %9 = arith.addf %6, %8 : vector<8x64xf32>
    %10 = vector.extract_strided_slice %9 {offsets = [0, 0], sizes = [8, 32], strides = [1, 1]} : vector<8x64xf32> to vector<8x32xf32>
    %c0_7 = arith.constant 0 : index
    %c0_8 = arith.constant 0 : index
    %11 = vector.load %arg5[%c0_7, %c0_8] : memref<1x32xf32, #tpu.memory_space<vmem>>, vector<1x32xf32>
    %12 = vector.broadcast %11 : vector<1x32xf32> to vector<8x32xf32>
    %13 = arith.addf %10, %12 : vector<8x32xf32>
    %cst_9 = arith.constant 0.000000e+00 : f32
    %14 = vector.broadcast %cst_9 : f32 to vector<8x32xf32>
    %15 = arith.maximumf %13, %14 : vector<8x32xf32>
    %16 = vector.extract_strided_slice %9 {offsets = [0, 32], sizes = [8, 32], strides = [1, 1]} : vector<8x64xf32> to vector<8x32xf32>
    %c0_10 = arith.constant 0 : index
    %c0_11 = arith.constant 0 : index
    %c0_12 = arith.constant 0 : index
    %17 = vector.load %arg6[%c0_10, %c0_11, %c0_12] : memref<1x1x32xf32, #tpu.memory_space<vmem>>, vector<1x1x32xf32>
    %18 = vector.shape_cast %17 : vector<1x1x32xf32> to vector<1x32xf32>
    %cst_13 = arith.constant dense<0.000000e+00> : vector<32xf32>
    %19 = vector.multi_reduction <add>, %15, %cst_13 [0] : vector<8x32xf32> to vector<32xf32>
    %20 = vector.shape_cast %19 : vector<32xf32> to vector<1x32xf32>
    %21 = arith.addf %18, %20 : vector<1x32xf32>
    %c0_14 = arith.constant 0 : index
    %c0_15 = arith.constant 0 : index
    %c0_16 = arith.constant 0 : index
    %22 = vector.load %arg6[%c0_14, %c0_15, %c0_16] : memref<1x1x32xf32, #tpu.memory_space<vmem>>, vector<1x1x32xf32>
    %23 = vector.shape_cast %22 : vector<1x1x32xf32> to vector<1x32xf32>
    %24 = vector.shape_cast %21 : vector<1x32xf32> to vector<1x1x32xf32>
    tpu.vector_store %arg6[%c0_14, %c0_15, %c0_16], %24 {strides = array<i32>} : memref<1x1x32xf32, #tpu.memory_space<vmem>>, vector<1x1x32xf32>,
    %c0_17 = arith.constant 0 : index
    %c0_18 = arith.constant 0 : index
    %c0_19 = arith.constant 0 : index
    %25 = vector.load %arg7[%c0_17, %c0_18, %c0_19] : memref<1x32x32xf32, #tpu.memory_space<vmem>>, vector<1x32x32xf32>
    %26 = vector.shape_cast %25 : vector<1x32x32xf32> to vector<32x32xf32>
    %27 = arith.truncf %15 : vector<8x32xf32> to vector<8x32xbf16>
    %28 = arith.truncf %16 : vector<8x32xf32> to vector<8x32xbf16>
    %cst_20 = arith.constant dense<0.000000e+00> : vector<32x32xf32>
    %29 = tpu.matmul %27, %28, %cst_20 {dimension_numbers = #tpu.dot_dimension_numbers<[0], [0], [1], [1], [0, 1, 1, 1], [], []>} : vector<8x32xbf16>, vector<8x32xbf16>, vector<32x32xf32> -> vector<32x32xf32>
    %30 = arith.addf %26, %29 : vector<32x32xf32>
    %c0_21 = arith.constant 0 : index
    %c0_22 = arith.constant 0 : index
    %c0_23 = arith.constant 0 : index
    %31 = vector.load %arg7[%c0_21, %c0_22, %c0_23] : memref<1x32x32xf32, #tpu.memory_space<vmem>>, vector<1x32x32xf32>
    %32 = vector.shape_cast %31 : vector<1x32x32xf32> to vector<32x32xf32>
    %33 = vector.shape_cast %30 : vector<32x32xf32> to vector<1x32x32xf32>
    tpu.vector_store %arg7[%c0_21, %c0_22, %c0_23], %33 {strides = array<i32>} : memref<1x32x32xf32, #tpu.memory_space<vmem>>, vector<1x32x32xf32>,
    return
  }
  func.func @transform_0(%arg0: i32, %arg1: i32) -> (i32, i32, i32) {
    %c0_i32 = arith.constant 0 : i32
    %c0_i32_0 = arith.constant 0 : i32
    return %arg0, %arg1, %c0_i32 : i32, i32, i32
  }
  func.func @transform_1(%arg0: i32, %arg1: i32) -> (i32, i32) {
    %c0_i32 = arith.constant 0 : i32
    %c0_i32_0 = arith.constant 0 : i32
    %c0_i32_1 = arith.constant 0 : i32
    return %c0_i32, %c0_i32_0 : i32, i32
  }
  func.func @transform_2(%arg0: i32, %arg1: i32) -> (i32, i32) {
    %c0_i32 = arith.constant 0 : i32
    %c0_i32_0 = arith.constant 0 : i32
    %c0_i32_1 = arith.constant 0 : i32
    return %c0_i32, %c0_i32_0 : i32, i32
  }
  func.func @transform_3(%arg0: i32, %arg1: i32) -> (i32, i32) {
    %c0_i32 = arith.constant 0 : i32
    %c0_i32_0 = arith.constant 0 : i32
    %c0_i32_1 = arith.constant 0 : i32
    return %c0_i32, %c0_i32_0 : i32, i32
  }
  func.func @transform_4(%arg0: i32, %arg1: i32) -> (i32, i32, i32) {
    %c0_i32 = arith.constant 0 : i32
    %c0_i32_0 = arith.constant 0 : i32
    %c0_i32_1 = arith.constant 0 : i32
    return %arg0, %c0_i32, %c0_i32_0 : i32, i32, i32
  }
  func.func @transform_5(%arg0: i32, %arg1: i32) -> (i32, i32, i32) {
    %c0_i32 = arith.constant 0 : i32
    %c0_i32_0 = arith.constant 0 : i32
    %c0_i32_1 = arith.constant 0 : i32
    return %arg0, %c0_i32, %c0_i32_0 : i32, i32, i32
  }
}

</mosaic_0001>

<llo_original>
// kernel: tpu_custom_call.1
$region0: #{tpu_custom_call.1}
  #allocation0 [shape = 'u32[]', space=smem, size = 0x4, offset = 0x4, fixed_abs, tag = 'smem constant byte address 0x4 - core index']
  #allocation1 [shape = 'u32[144,128]{1,0:T(1,128)}', space=vmem, size = 0x12000, scoped, tag = 'internal scratch']
  %s0 = inlined_call_operand.hbm [shape: bf16[2,8,32], index: 0, kind: input, shape index: {}]
  %s1 = inlined_call_operand.hbm [shape: bf16[32,64], index: 1, kind: input, shape index: {}]
  %s2 = inlined_call_operand.vmem [shape: f32[1,64], index: 2, kind: input, shape index: {}]
  %s3 = inlined_call_operand.vmem [shape: f32[1,32], index: 3, kind: input, shape index: {}]
  %s4 = inlined_call_operand.hbm [shape: f32[2,1,32], index: 4, kind: output, shape index: {0}]
  %s5 = inlined_call_operand.hbm [shape: f32[2,32,32], index: 5, kind: output, shape index: {1}]
  %6 = xla_tuple %s4, %s5
  %s7 = sld [smem:[#allocation0]]
  $region69: #{tpu_custom_call.1} parent=0
    _
  %s9 = ssub.s32 1, %s7
  %s10 = scalar_select 0, %s9, %s7
  $region1: #{tpu_custom_call.1} parent=0
    #allocation2 [shape = 'u8[4096]{0}', space=vmem, size = 0x1000, scoped, tag = 'input window, operand 0']
    #allocation3 [shape = 's32[2]{0}', space=sflag, size = 0x8, scoped, tag = 'scoped memory for tpu_custom_call.1']
    #allocation4 [shape = 's32[2]{0}', space=sflag, size = 0x8, scoped, tag = 'scoped memory for tpu_custom_call.1']
    #allocation5 [shape = 'u8[8192]{0}', space=vmem, size = 0x2000, scoped, tag = 'input window, operand 1, single buffered']
    #allocation6 [shape = 's32[1]{0}', space=sflag, size = 0x4, scoped, tag = 'scoped memory for tpu_custom_call.1']
    #allocation7 [shape = 'u8[1024]{0}', space=vmem, size = 0x400, scoped, tag = 'output window, operand 0']
    #allocation8 [shape = 'u8[32768]{0}', space=vmem, size = 0x8000, scoped, tag = 'output window, operand 1']
    #allocation9 [shape = 's32[2]{0}', space=sflag, size = 0x8, scoped, tag = 'scoped memory for tpu_custom_call.1']
    %11 = vsyncpa [#allocation3], 0
    %s12 = scalar_lea.sflag [#allocation3], 1
    %13 = vsyncpa %s12, 0
    %14 = vsyncpa [#allocation6], 0
    %15 = vsyncpa [#allocation4], 0
    %s16 = scalar_lea.sflag [#allocation4], 1
    %17 = vsyncpa %s16, 0
    %18 = vsyncpa [#allocation9], 0
    %s19 = scalar_lea.sflag [#allocation9], 1
    %20 = vsyncpa %s19, 0
    loop: start=0, step=1, limit=4
    $region2: #{tpu_custom_call.1} parent=1 // loop_pre_header
      _
    $region3: #{tpu_custom_call.1} parent=1 // loop_header
      %s22 = sphi 0, %s26
      %p23 = scmp.ge.s32.totalorder %s22, 4
      %s29 = sphi 0, %s41
      %s30 = sphi 0, %s37
      %s31 = sphi 0, %s29
      %s32 = sphi 0, %s30
      %s33 = sphi 0, %s31
      %s34 = sphi 0, %s32
      %s46 = sphi 0, %s48
      %s49 = sphi 0, %s46
      %s50 = sphi 0, %s49
      %s66 = sphi 0, %s50
      %s70 = sphi 0, %s70
      %s72 = sphi 0, %s70
      %s73 = sphi 0, %s72
      %s87 = sphi 0, %s73
      %s91 = sphi 0, %s91
      %s93 = sphi 0, %s91
      %s94 = sphi 0, %s93
      %s108 = sphi 0, %s94
      %s112 = sphi 0, %s112
      %s114 = sphi 0, %s112
      %s115 = sphi 0, %s114
      %s129 = sphi 0, %s115
      %s135 = sphi 0, %s137
      %s138 = sphi 0, %s135
      %s139 = sphi 0, %s138
      %s155 = sphi 0, %s139
      %s161 = sphi 0, %s163
      %s164 = sphi 0, %s161
      %s165 = sphi 0, %s164
      %s181 = sphi 0, %s165
    $region4: #{tpu_custom_call.1} parent=1 // loop_header_branch
      %25 = sbr.rel (%p23) target = $region8
    $region5: #{tpu_custom_call.1} parent=1 // loop_body
      %s27 = ssub.s32 %s22, 1
      %s28 = ssub.s32 %s22, 2
      %s35 = sadd.s32 1, %s30
      %p36 = scmp.ge.s32.totalorder %s35, 1
      %s37 = scalar_select %p36, 0, %s35
      %s38 = sadd.s32 1, %s29
      %s39 = scalar_select %p36, %s38, %s29
      %p40 = scmp.ge.s32.totalorder %s39, 2
      %s41 = scalar_select %p40, 0, %s39
      %s42 = ssub.s32 %s29, %s41
      %s43 = ssub.s32 %s30, %s37
      %s44 = sor.u32 %s42, %s43
      %p45 = scmp.eq.s32.totalorder %s44, 0
      %s47 = sadd.s32 %s46, 1
      %s48 = scalar_select %p45, %s46, %s47
      %p51 = pneg %p45
      %p52 = scmp.eq.s32.totalorder %s22, 1
      %p53 = por %p51, %p52
      %p54 = scmp.ne.s32.totalorder %s46, %s49
      %p55 = scmp.eq.s32.totalorder %s22, 0
      %p56 = por %p54, %p55
      %p57 = scmp.ne.s32.totalorder %s46, %s49
      %p58 = scmp.eq.s32.totalorder %s27, 1
      %p59 = por %p57, %p58
      %p60 = scmp.ne.s32.totalorder %s49, %s50
      %p61 = scmp.eq.s32.totalorder %s27, 0
      %p62 = por %p60, %p61
      %p63 = scmp.ne.s32.totalorder %s49, %s50
      %p64 = scmp.eq.s32.totalorder %s28, 1
      %p65 = por %p63, %p64
      %p67 = scmp.ne.s32.totalorder %s50, %s66
      %p68 = scmp.eq.s32.totalorder %s28, 0
      %p69 = por %p67, %p68
      %s71 = sadd.s32 %s70, 1
      %p74 = scmp.eq.s32.totalorder %s22, 1
      %p75 = scmp.ne.s32.totalorder %s70, %s72
      %p76 = scmp.eq.s32.totalorder %s22, 0
      %p77 = por %p75, %p76
      %p78 = scmp.ne.s32.totalorder %s70, %s72
      %p79 = scmp.eq.s32.totalorder %s27, 1
      %p80 = por %p78, %p79
      %p81 = scmp.ne.s32.totalorder %s72, %s73
      %p82 = scmp.eq.s32.totalorder %s27, 0
      %p83 = por %p81, %p82
      %p84 = scmp.ne.s32.totalorder %s72, %s73
      %p85 = scmp.eq.s32.totalorder %s28, 1
      %p86 = por %p84, %p85
      %p88 = scmp.ne.s32.totalorder %s73, %s87
      %p89 = scmp.eq.s32.totalorder %s28, 0
      %p90 = por %p88, %p89
      %s92 = sadd.s32 %s91, 1
      %p95 = scmp.eq.s32.totalorder %s22, 1
      %p96 = scmp.ne.s32.totalorder %s91, %s93
      %p97 = scmp.eq.s32.totalorder %s22, 0
      %p98 = por %p96, %p97
      %p99 = scmp.ne.s32.totalorder %s91, %s93
      %p100 = scmp.eq.s32.totalorder %s27, 1
      %p101 = por %p99, %p100
      %p102 = scmp.ne.s32.totalorder %s93, %s94
      %p103 = scmp.eq.s32.totalorder %s27, 0
      %p104 = por %p102, %p103
      %p105 = scmp.ne.s32.totalorder %s93, %s94
      %p106 = scmp.eq.s32.totalorder %s28, 1
      %p107 = por %p105, %p106
      %p109 = scmp.ne.s32.totalorder %s94, %s108
      %p110 = scmp.eq.s32.totalorder %s28, 0
      %p111 = por %p109, %p110
      %s113 = sadd.s32 %s112, 1
      %p116 = scmp.eq.s32.totalorder %s22, 1
      %p117 = scmp.ne.s32.totalorder %s112, %s114
      %p118 = scmp.eq.s32.totalorder %s22, 0
      %p119 = por %p117, %p118
      %p120 = scmp.ne.s32.totalorder %s112, %s114
      %p121 = scmp.eq.s32.totalorder %s27, 1
      %p122 = por %p120, %p121
      %p123 = scmp.ne.s32.totalorder %s114, %s115
      %p124 = scmp.eq.s32.totalorder %s27, 0
      %p125 = por %p123, %p124
      %p126 = scmp.ne.s32.totalorder %s114, %s115
      %p127 = scmp.eq.s32.totalorder %s28, 1
      %p128 = por %p126, %p127
      %p130 = scmp.ne.s32.totalorder %s115, %s129
      %p131 = scmp.eq.s32.totalorder %s28, 0
      %p132 = por %p130, %p131
      %s133 = ssub.s32 %s29, %s41
      %p134 = scmp.eq.s32.totalorder %s133, 0
      %s136 = sadd.s32 %s135, 1
      %s137 = scalar_select %p134, %s135, %s136
      %p140 = pneg %p134
      %p141 = scmp.eq.s32.totalorder %s22, 1
      %p142 = por %p140, %p141
      %p143 = scmp.ne.s32.totalorder %s135, %s138
      %p144 = scmp.eq.s32.totalorder %s22, 0
      %p145 = por %p143, %p144
      %p146 = scmp.ne.s32.totalorder %s135, %s138
      %p147 = scmp.eq.s32.totalorder %s27, 1
      %p148 = por %p146, %p147
      %p149 = scmp.ne.s32.totalorder %s138, %s139
      %p150 = scmp.eq.s32.totalorder %s27, 0
      %p151 = por %p149, %p150
      %p152 = scmp.ne.s32.totalorder %s138, %s139
      %p153 = scmp.eq.s32.totalorder %s28, 1
      %p154 = por %p152, %p153
      %p156 = scmp.ne.s32.totalorder %s139, %s155
      %p157 = scmp.eq.s32.totalorder %s28, 0
      %p158 = por %p156, %p157
      %s159 = ssub.s32 %s29, %s41
      %p160 = scmp.eq.s32.totalorder %s159, 0
      %s162 = sadd.s32 %s161, 1
      %s163 = scalar_select %p160, %s161, %s162
      %p166 = pneg %p160
      %p167 = scmp.eq.s32.totalorder %s22, 1
      %p168 = por %p166, %p167
      %p169 = scmp.ne.s32.totalorder %s161, %s164
      %p170 = scmp.eq.s32.totalorder %s22, 0
      %p171 = por %p169, %p170
      %p172 = scmp.ne.s32.totalorder %s161, %s164
      %p173 = scmp.eq.s32.totalorder %s27, 1
      %p174 = por %p172, %p173
      %p175 = scmp.ne.s32.totalorder %s164, %s165
      %p176 = scmp.eq.s32.totalorder %s27, 0
      %p177 = por %p175, %p176
      %p178 = scmp.ne.s32.totalorder %s164, %s165
      %p179 = scmp.eq.s32.totalorder %s28, 1
      %p180 = por %p178, %p179
      %p182 = scmp.ne.s32.totalorder %s165, %s181
      %p183 = scmp.eq.s32.totalorder %s28, 0
      %p184 = por %p182, %p183
      %p185 = scmp.le.s32.totalorder 1, %s22
      %p186 = scmp.lt.s32.totalorder %s22, 3
      %p187 = pnand %p185, %p186
      %p188 = pneg %p187
      // Predicated region
      $region9: #{tpu_custom_call.1} parent=5 // pred_check
        _
      $region10: #{tpu_custom_call.1} parent=5 // pred_check_branch
        %190 = sbr.rel (%p187) target = $region12
      $region11: #{tpu_custom_call.1} parent=5 // pred_region
        %s191 = ssub.s32 %s22, 1
        // Predicated region
        $region13: #{tpu_custom_call.1} parent=11 // pred_check
          %p192 = pneg %p83
        $region14: #{tpu_custom_call.1} parent=11 // pred_check_branch
          %194 = sbr.rel (%p192) target = $region16
        $region15: #{tpu_custom_call.1} parent=11 // pred_region
          %s196 = ssub.s32 256, 256
          %197 = vsyncadd [#allocation6], %s196
          %s198 = sshll.u32 [#allocation5], 4
          %s199 = int_to_ptr.vmem [resolvable:$true] %s198
          %204 = dma.hbm_to_vmem [thread:$0]  %s1, 256, %s199, [#allocation6], 64, 64, 4
        $region16: #{tpu_custom_call.1} parent=11 // pred_fallthru
          _
        // Predicated region
        $region17: #{tpu_custom_call.1} parent=11 // pred_check
          %p205 = pneg %p104
        $region18: #{tpu_custom_call.1} parent=11 // pred_check_branch
          %207 = sbr.rel (%p205) target = $region20
        $region19: #{tpu_custom_call.1} parent=11 // pred_region
          _
        $region20: #{tpu_custom_call.1} parent=11 // pred_fallthru
          _
        // Predicated region
        $region21: #{tpu_custom_call.1} parent=11 // pred_check
          %p208 = pneg %p125
        $region22: #{tpu_custom_call.1} parent=11 // pred_check_branch
          %210 = sbr.rel (%p208) target = $region24
        $region23: #{tpu_custom_call.1} parent=11 // pred_region
          _
        $region24: #{tpu_custom_call.1} parent=11 // pred_fallthru
          _
      $region12: #{tpu_custom_call.1} parent=5 // pred_fallthru
        _
      %p211 = scmp.lt.s32.totalorder %s22, 2
      // Predicated region
      $region25: #{tpu_custom_call.1} parent=5 // pred_check
        %p212 = pneg %p211
      $region26: #{tpu_custom_call.1} parent=5 // pred_check_branch
        %214 = sbr.rel (%p212) target = $region28
      $region27: #{tpu_custom_call.1} parent=5 // pred_region
        // Predicated region
        $region29: #{tpu_custom_call.1} parent=27 // pred_check
          %p215 = pneg %p56
        $region30: #{tpu_custom_call.1} parent=27 // pred_check_branch
          %217 = sbr.rel (%p215) target = $region32
        $region31: #{tpu_custom_call.1} parent=27 // pred_region
          %s218 = sand.u32 %s46, 1
          %s219 = scalar_lea.sflag [#allocation3], %s218
          %s220 = sand.u32 %s46, 1
          %s221 = smul.addr %s220, 4
          %s222 = scalar_lea.vmem [#allocation2], %s221
          %s224 = ssub.s32 64, 64
          %225 = vsyncadd %s219, %s224
          %s226 = sadd.s32 %s30, %s29
          %s227 = smul.addr %s226, 64
          %s228 = scalar_lea.hbm %s0, %s227
          %s230 = sshll.u32 %s222, 4
          %s231 = int_to_ptr.vmem [resolvable:$true] %s230
          %233 = dma.hbm_to_vmem [thread:$0]  %s228, 64, %s231, %s219
        $region32: #{tpu_custom_call.1} parent=27 // pred_fallthru
          _
      $region28: #{tpu_custom_call.1} parent=5 // pred_fallthru
        _
      %p234 = scmp.le.s32.totalorder 1, %s22
      %p235 = scmp.lt.s32.totalorder %s22, 3
      %p236 = pnand %p234, %p235
      %p237 = pneg %p236
      // Predicated region
      $region33: #{tpu_custom_call.1} parent=5 // pred_check
        _
      $region34: #{tpu_custom_call.1} parent=5 // pred_check_branch
        %239 = sbr.rel (%p236) target = $region36
      $region35: #{tpu_custom_call.1} parent=5 // pred_region
        %s240 = ssub.s32 %s22, 1
        %s241 = sand.u32 %s49, 1
        %s242 = scalar_lea.sflag [#allocation3], %s241
        %s243 = sand.u32 %s49, 1
        %s244 = smul.addr %s243, 4
        %s245 = scalar_lea.vmem [#allocation2], %s244
        // Predicated region
        $region37: #{tpu_custom_call.1} parent=35 // pred_check
          %p246 = pneg %p62
        $region38: #{tpu_custom_call.1} parent=35 // pred_check_branch
          %248 = sbr.rel (%p246) target = $region40
        $region39: #{tpu_custom_call.1} parent=35 // pred_region
          %249 = dma.done %s242, 64
        $region40: #{tpu_custom_call.1} parent=35 // pred_fallthru
          _
        // Predicated region
        $region41: #{tpu_custom_call.1} parent=35 // pred_check
          %p250 = pneg %p83
        $region42: #{tpu_custom_call.1} parent=35 // pred_check_branch
          %252 = sbr.rel (%p250) target = $region44
        $region43: #{tpu_custom_call.1} parent=35 // pred_region
          %253 = dma.done [#allocation6], 256
        $region44: #{tpu_custom_call.1} parent=35 // pred_fallthru
          _
        %s254 = sand.u32 %s49, 1
        %s255 = scalar_lea.sflag [#allocation3], %s254
        %s256 = sand.u32 %s49, 1
        %s257 = smul.addr %s256, 4
        %s258 = scalar_lea.vmem [#allocation2], %s257
        %p259 = pneg %p62
        %p260 = pneg %p59
        %p261 = pneg %p83
        %p262 = pneg %p80
        %p263 = pneg %p104
        %p264 = pneg %p101
        %p265 = pneg %p125
        %p266 = pneg %p122
        %p267 = pneg %p151
        %p268 = pneg %p148
        %s269 = sand.u32 %s138, 1
        %s270 = scalar_lea.sflag [#allocation4], %s269
        %s271 = sand.u32 %s138, 1
        %s272 = scalar_lea.vmem [#allocation7], %s271
        %p273 = pneg %p177
        %p274 = pneg %p174
        %s275 = sand.u32 %s164, 1
        %s276 = scalar_lea.sflag [#allocation9], %s275
        %s277 = sand.u32 %s164, 1
        %s278 = smul.addr %s277, 32
        %s279 = scalar_lea.vmem [#allocation8], %s278
        %p281 = scmp.eq.s32.totalorder %s32, 0
        // Predicated region
        $region45: #{tpu_custom_call.1} parent=35 // pred_check
          %p282 = pneg %p281
        $region46: #{tpu_custom_call.1} parent=35 // pred_check_branch
          %284 = sbr.rel (%p282) target = $region48
        $region47: #{tpu_custom_call.1} parent=35 // pred_region
          %vm285 = vcmask 253952
          %286 = vst.msk [vmem:[%s272] sm:$0x1] %vm285, 0.0
          %vm287 = vcmask 261120
          %288 = vst.msk [vmem:[%s279] sm:$0xff] %vm287, 0.0
          %289 = vst.msk [vmem:[%s279 + $0x8] sm:$0xff] %vm287, 0.0
          %290 = vst.msk [vmem:[%s279 + $0x10] sm:$0xff] %vm287, 0.0
          %291 = vst.msk [vmem:[%s279 + $0x18] sm:$0xff] %vm287, 0.0
        $region48: #{tpu_custom_call.1} parent=35 // pred_fallthru
          _
        %v292 = vld [vmem:[%s245] sm:$0xf]
        %v293 = vld [vmem:[#allocation5] sm:$0xf]
        %v294 = vld [vmem:[#allocation5 + $0x4] sm:$0xf]
        %v295 = vld [vmem:[#allocation5 + $0x8] sm:$0xf]
        %v296 = vld [vmem:[#allocation5 + $0xc] sm:$0xf]
        %v297 = vld [vmem:[%s2] sm:$0x1]
        %v299 = vlaneseq
        %v300 = vshrl.u32 %v299, 7
        %v301 = vsub.s32 0, %v300
        %v302 = vrot.slane %v297, %v301
        %v308 = vunpack.c.l.b16 %v293
        %v309 = vunpack.c.l.b16 %v294
        %v310 = vunpack.c.l.b16 %v295
        %v311 = vunpack.c.l.b16 %v296
        %v312 = vpack.c.b16 %v309, %v308
        %v313 = vpack.c.b16 %v311, %v310
        %vm316 = vcmask 261120
        %v318 = vsel %vm316, %v292, 0
        %320 = vmatprep.subr.bf16.mxu0 0
        %321 = vmatpush1.bf16.msra.mxu0 %v312
        %322 = vmatprep.subr.bf16.mxu0 0
        %323 = vmatpush1.bf16.msra.mxu0 %v313
        %324 = vmatprep.subr.bf16.mxu0 0
        %325 = vmatpush1.bf16.msra.mxu0 0
        %326 = vmatprep.subr.bf16.mxu0 0
        %327 = vmatpush1.bf16.msra.mxu0 0
        %328 = vmatprep.subr.bf16.mxu0 0
        %329 = vmatpush1.bf16.msra.mxu0 0
        %330 = vmatprep.subr.bf16.mxu0 0
        %331 = vmatpush1.bf16.msra.mxu0 0
        %332 = vmatprep.subr.bf16.mxu0 0
        %333 = vmatpush1.bf16.msra.mxu0 0
        %334 = vmatprep.subr.bf16.mxu0 0
        %335 = vmatpush1.bf16.msra.mxu0 0
        %336 = vmatprep.subr.bf16.mxu0 0
        %337 = vmatpush1.bf16.msra.mxu0 0
        %338 = vmatprep.subr.bf16.mxu0 0
        %339 = vmatpush1.bf16.msra.mxu0 0
        %340 = vmatprep.subr.bf16.mxu0 0
        %341 = vmatpush1.bf16.msra.mxu0 0
        %342 = vmatprep.subr.bf16.mxu0 0
        %343 = vmatpush1.bf16.msra.mxu0 0
        %344 = vmatprep.subr.bf16.mxu0 0
        %345 = vmatpush1.bf16.msra.mxu0 0
        %346 = vmatprep.subr.bf16.mxu0 0
        %347 = vmatpush1.bf16.msra.mxu0 0
        %348 = vmatprep.subr.bf16.mxu0 0
        %349 = vmatpush1.bf16.msra.mxu0 0
        %350 = vmatprep.subr.bf16.mxu0 0
        %351 = vmatpush1.bf16.msra.mxu0 0
        %352 = vmatprep.mubr.bf16.mxu0 0
        %353 = vmatmul.mubr.bf16.gmra.mrb[0].mxu0 %v318
        %v354 = vpop.f32.mrb[0].mxu0
        %v355 = vadd.f32 %v302, %v354
        %v356 = vpop.f32.mrb[0].mxu0
        %v357 = vpop.f32.mrb[0].mxu0
        %v358 = vpop.f32.mrb[0].mxu0
        %359 = vdwg.mxu0
        %v360 = vld [vmem:[%s3] sm:$0x1]
        %v362 = vlaneseq
        %v363 = vshrl.u32 %v362, 7
        %v364 = vsub.s32 0, %v363
        %v365 = vrot.slane %v360, %v364
        %v367 = vadd.f32 %v355, %v365
        %v368 = vmax.f32 %v367, 0.0
        %v369 = vld [vmem:[%s272] sm:$0x1]
        %v370 = vsel %vm316, %v368, 0.0
        %v371 = vrot.slane %v370, 4
        %v372 = vadd.f32 %v370, %v371
        %v373 = vrot.slane %v372, 2
        %v374 = vadd.f32 %v372, %v373
        %v375 = vrot.slane %v374, 1
        %v376 = vadd.f32 %v374, %v375
        %v377 = vadd.f32 %v369, %v376
        %vm378 = vcmask 253952
        %379 = vst.msk [vmem:[%s272] sm:$0x1] %vm378, %v377
        %v380 = vld [vmem:[%s279] sm:$0xff]
        %v381 = vld [vmem:[%s279 + $0x8] sm:$0xff]
        %v382 = vld [vmem:[%s279 + $0x10] sm:$0xff]
        %v383 = vld [vmem:[%s279 + $0x18] sm:$0xff]
        %v384 = vpack.c.bf16 %v368, %v368
        %v385 = vpack.c.bf16 %v355, %v355
        %386 = vxpose.xlu0.c.b16.start [1/8] %v384, 128
        %387 = vxpose.xlu0.c.b16.cont [2/8] 0, 128
        %388 = vxpose.xlu0.c.b16.cont [3/8] 0, 128
        %389 = vxpose.xlu0.c.b16.cont [4/8] 0, 128
        %390 = vxpose.xlu0.c.b16.cont [5/8] 0, 128
        %391 = vxpose.xlu0.c.b16.cont [6/8] 0, 128
        %392 = vxpose.xlu0.c.b16.cont [7/8] 0, 128
        %393 = vxpose.xlu0.c.b16.end [8/8] 0, 128
        %v394 = vpop.trf.xlu0
        %v395 = vpop.trf.xlu0
        %v396 = vpop.trf.xlu0
        %v397 = vpop.trf.xlu0
        %v398 = vpop.trf.xlu0
        %v399 = vpop.trf.xlu0
        %v400 = vpop.trf.xlu0
        %v401 = vpop.trf.xlu0
        %403 = vrot.lane.b32.xlu0 %v385, 96
        %v404 = vpop.permute.xlu0 %403
        %vm405 = vcmask 64512
        %v407 = vsel %vm405, %v394, 0
        %v410 = vsel %vm405, %v395, 0
        %vm412 = vcmask 1043456
        %v414 = vsel %vm412, %v404, 0
        %416 = vmatprep.subr.bf16.mxu0 0
        %417 = vmatpush1.bf16.msra.mxu0 %v414
        %418 = vmatprep.subr.bf16.mxu0 0
        %419 = vmatpush1.bf16.msra.mxu0 0
        %420 = vmatprep.subr.bf16.mxu0 0
        %421 = vmatpush1.bf16.msra.mxu0 0
        %422 = vmatprep.subr.bf16.mxu0 0
        %423 = vmatpush1.bf16.msra.mxu0 0
        %424 = vmatprep.subr.bf16.mxu0 0
        %425 = vmatpush1.bf16.msra.mxu0 0
        %426 = vmatprep.subr.bf16.mxu0 0
        %427 = vmatpush1.bf16.msra.mxu0 0
        %428 = vmatprep.subr.bf16.mxu0 0
        %429 = vmatpush1.bf16.msra.mxu0 0
        %430 = vmatprep.subr.bf16.mxu0 0
        %431 = vmatpush1.bf16.msra.mxu0 0
        %432 = vmatprep.subr.bf16.mxu0 0
        %433 = vmatpush1.bf16.msra.mxu0 0
        %434 = vmatprep.subr.bf16.mxu0 0
        %435 = vmatpush1.bf16.msra.mxu0 0
        %436 = vmatprep.subr.bf16.mxu0 0
        %437 = vmatpush1.bf16.msra.mxu0 0
        %438 = vmatprep.subr.bf16.mxu0 0
        %439 = vmatpush1.bf16.msra.mxu0 0
        %440 = vmatprep.subr.bf16.mxu0 0
        %441 = vmatpush1.bf16.msra.mxu0 0
        %442 = vmatprep.subr.bf16.mxu0 0
        %443 = vmatpush1.bf16.msra.mxu0 0
        %444 = vmatprep.subr.bf16.mxu0 0
        %445 = vmatpush1.bf16.msra.mxu0 0
        %446 = vmatprep.subr.bf16.mxu0 0
        %447 = vmatpush1.bf16.msra.mxu0 0
        %448 = vmatprep.mubr.bf16.mxu0 0
        %449 = vmatmul.mubr.bf16.gmra.mrb[0].mxu0 %v407
        %v450 = vpop.f32.mrb[0].mxu0
        %v451 = vadd.f32 0.0, %v450
        %v452 = vpop.f32.mrb[0].mxu0
        %v453 = vpop.f32.mrb[0].mxu0
        %v454 = vadd.f32 0.0, %v453
        %v455 = vpop.f32.mrb[0].mxu0
        %456 = vmatprep.mubr.bf16.mxu0 0
        %457 = vmatmul.mubr.bf16.gmra.mrb[0].mxu0 %v410
        %v458 = vpop.f32.mrb[0].mxu0
        %v459 = vadd.f32 0.0, %v458
        %v460 = vpop.f32.mrb[0].mxu0
        %v461 = vpop.f32.mrb[0].mxu0
        %v462 = vadd.f32 0.0, %v461
        %v463 = vpop.f32.mrb[0].mxu0
        %464 = vdwg.mxu0
        %v465 = vadd.f32 %v380, %v451
        %v466 = vadd.f32 %v381, %v454
        %v467 = vadd.f32 %v382, %v459
        %v468 = vadd.f32 %v383, %v462
        %469 = vst.msk [vmem:[%s279] sm:$0xff] %vm316, %v465
        %470 = vst.msk [vmem:[%s279 + $0x8] sm:$0xff] %vm316, %v466
        %471 = vst.msk [vmem:[%s279 + $0x10] sm:$0xff] %vm316, %v467
        %472 = vst.msk [vmem:[%s279 + $0x18] sm:$0xff] %vm316, %v468
        %s473 = sand.u32 %s138, 1
        %s474 = scalar_lea.sflag [#allocation4], %s473
        %s475 = sand.u32 %s138, 1
        %s476 = scalar_lea.vmem [#allocation7], %s475
        %s477 = sand.u32 %s164, 1
        %s478 = scalar_lea.sflag [#allocation9], %s477
        %s479 = sand.u32 %s164, 1
        %s480 = smul.addr %s479, 32
        %s481 = scalar_lea.vmem [#allocation8], %s480
        // Predicated region
        $region49: #{tpu_custom_call.1} parent=35 // pred_check
          %p482 = pneg %p148
        $region50: #{tpu_custom_call.1} parent=35 // pred_check_branch
          %484 = sbr.rel (%p482) target = $region52
        $region51: #{tpu_custom_call.1} parent=35 // pred_region
          %s486 = ssub.s32 16, 16
          %487 = vsyncadd %s474, %s486
          %s488 = smul.addr %s31, 16
          %s489 = scalar_lea.hbm %s4, %s488
          %s491 = sshll.u32 %s476, 4
          %s492 = int_to_ptr.vmem [resolvable:$true] %s491
          %494 = dma.vmem_to_hbm [thread:$0]  %s492, 16, %s489, %s474
        $region52: #{tpu_custom_call.1} parent=35 // pred_fallthru
          _
        // Predicated region
        $region53: #{tpu_custom_call.1} parent=35 // pred_check
          %p495 = pneg %p174
        $region54: #{tpu_custom_call.1} parent=35 // pred_check_branch
          %497 = sbr.rel (%p495) target = $region56
        $region55: #{tpu_custom_call.1} parent=35 // pred_region
          %s499 = ssub.s32 512, 512
          %500 = vsyncadd %s478, %s499
          %s501 = smul.addr %s31, 4
          %s502 = smul.addr %s501, 128
          %s503 = scalar_lea.hbm %s5, %s502
          %s504 = sshll.u32 %s481, 4
          %s505 = int_to_ptr.vmem [resolvable:$true] %s504
          %510 = dma.vmem_to_hbm [thread:$0]  %s505, 512, %s503, %s478, 128, 128, 8
        $region56: #{tpu_custom_call.1} parent=35 // pred_fallthru
          _
      $region36: #{tpu_custom_call.1} parent=5 // pred_fallthru
        _
      %p511 = scmp.le.s32.totalorder 2, %s22
      // Predicated region
      $region57: #{tpu_custom_call.1} parent=5 // pred_check
        %p512 = pneg %p511
      $region58: #{tpu_custom_call.1} parent=5 // pred_check_branch
        %514 = sbr.rel (%p512) target = $region60
      $region59: #{tpu_custom_call.1} parent=5 // pred_region
        %s515 = ssub.s32 %s22, 2
        // Predicated region
        $region61: #{tpu_custom_call.1} parent=59 // pred_check
          %p516 = pneg %p154
        $region62: #{tpu_custom_call.1} parent=59 // pred_check_branch
          %518 = sbr.rel (%p516) target = $region64
        $region63: #{tpu_custom_call.1} parent=59 // pred_region
          %s519 = sand.u32 %s139, 1
          %s520 = scalar_lea.sflag [#allocation4], %s519
          %s521 = sand.u32 %s139, 1
          %s522 = scalar_lea.vmem [#allocation7], %s521
          %523 = dma.done %s520, 16
        $region64: #{tpu_custom_call.1} parent=59 // pred_fallthru
          _
        // Predicated region
        $region65: #{tpu_custom_call.1} parent=59 // pred_check
          %p524 = pneg %p180
        $region66: #{tpu_custom_call.1} parent=59 // pred_check_branch
          %526 = sbr.rel (%p524) target = $region68
        $region67: #{tpu_custom_call.1} parent=59 // pred_region
          %s527 = sand.u32 %s165, 1
          %s528 = scalar_lea.sflag [#allocation9], %s527
          %s529 = sand.u32 %s165, 1
          %s530 = smul.addr %s529, 32
          %s531 = scalar_lea.vmem [#allocation8], %s530
          %532 = dma.done %s528, 512
        $region68: #{tpu_custom_call.1} parent=59 // pred_fallthru
          _
      $region60: #{tpu_custom_call.1} parent=5 // pred_fallthru
        _
    $region6: #{tpu_custom_call.1} parent=1 // loop_footer
      %s26 = sadd.s32 1, %s22
    $region7: #{tpu_custom_call.1} parent=1 // loop_footer_branch
      %21 = sbr.rel target = $region3
    $region8: #{tpu_custom_call.1} parent=1 // loop_exit
      _
    %533 = vsyncpa [#allocation3], 1
    %s534 = scalar_lea.sflag [#allocation3], 1
    %535 = vsyncpa %s534, 1
    %536 = vsyncpa [#allocation6], 1
    %537 = vsyncpa [#allocation4], 1
    %s538 = scalar_lea.sflag [#allocation4], 1
    %539 = vsyncpa %s538, 1
    %540 = vsyncpa [#allocation9], 1
    %s541 = scalar_lea.sflag [#allocation9], 1
    %542 = vsyncpa %s541, 1

// kernel: tpu_custom_call.1
$region0: #{tpu_custom_call.1}
  #allocation0 [shape = 'u32[]', space=smem, size = 0x4, offset = 0x4, fixed_abs, tag = 'smem constant byte address 0x4 - core index']
  #allocation1 [shape = 'u32[144,128]{1,0:T(1,128)}', space=vmem, size = 0x12000, scoped, tag = 'internal scratch']
  %s0 = inlined_call_operand.hbm [shape: bf16[2,8,32], index: 0, kind: input, shape index: {}]
  %s1 = inlined_call_operand.hbm [shape: bf16[32,64], index: 1, kind: input, shape index: {}]
  %s2 = inlined_call_operand.vmem [shape: f32[1,64], index: 2, kind: input, shape index: {}]
  %s3 = inlined_call_operand.vmem [shape: f32[1,32], index: 3, kind: input, shape index: {}]
  %s4 = inlined_call_operand.hbm [shape: f32[2,1,32], index: 4, kind: output, shape index: {0}]
  %s5 = inlined_call_operand.hbm [shape: f32[2,32,32], index: 5, kind: output, shape index: {1}]
  %6 = xla_tuple %s4, %s5
  %s7 = sld [smem:[#allocation0]]
  $region69: #{tpu_custom_call.1} parent=0
    _
  %s9 = ssub.s32 1, %s7
  %s10 = scalar_select 0, %s9, %s7
  $region1: #{tpu_custom_call.1} parent=0
    #allocation2 [shape = 'u8[4096]{0}', space=vmem, size = 0x1000, scoped, tag = 'input window, operand 0']
    #allocation3 [shape = 's32[2]{0}', space=sflag, size = 0x8, scoped, tag = 'scoped memory for tpu_custom_call.1']
    #allocation4 [shape = 's32[2]{0}', space=sflag, size = 0x8, scoped, tag = 'scoped memory for tpu_custom_call.1']
    #allocation5 [shape = 'u8[8192]{0}', space=vmem, size = 0x2000, scoped, tag = 'input window, operand 1, single buffered']
    #allocation6 [shape = 's32[1]{0}', space=sflag, size = 0x4, scoped, tag = 'scoped memory for tpu_custom_call.1']
    #allocation7 [shape = 'u8[1024]{0}', space=vmem, size = 0x400, scoped, tag = 'output window, operand 0']
    #allocation8 [shape = 'u8[32768]{0}', space=vmem, size = 0x8000, scoped, tag = 'output window, operand 1']
    #allocation9 [shape = 's32[2]{0}', space=sflag, size = 0x8, scoped, tag = 'scoped memory for tpu_custom_call.1']
    %11 = vsyncpa [#allocation3], 0
    %s12 = scalar_lea.sflag [#allocation3], 1
    %13 = vsyncpa %s12, 0
    %14 = vsyncpa [#allocation6], 0
    %15 = vsyncpa [#allocation4], 0
    %s16 = scalar_lea.sflag [#allocation4], 1
    %17 = vsyncpa %s16, 0
    %18 = vsyncpa [#allocation9], 0
    %s19 = scalar_lea.sflag [#allocation9], 1
    %20 = vsyncpa %s19, 0
    loop: start=0, step=1, limit=4
    $region2: #{tpu_custom_call.1} parent=1 // loop_pre_header
      _
    $region3: #{tpu_custom_call.1} parent=1 // loop_header
      %s22 = sphi 0, %s26
      %p23 = scmp.ge.s32.totalorder %s22, 4
      %s29 = sphi 0, %s41
      %s30 = sphi 0, %s37
      %s31 = sphi 0, %s29
      %s32 = sphi 0, %s30
      %s33 = sphi 0, %s31
      %s34 = sphi 0, %s32
      %s46 = sphi 0, %s48
      %s49 = sphi 0, %s46
      %s50 = sphi 0, %s49
      %s66 = sphi 0, %s50
      %s70 = sphi 0, %s70
      %s72 = sphi 0, %s70
      %s73 = sphi 0, %s72
      %s87 = sphi 0, %s73
      %s91 = sphi 0, %s91
      %s93 = sphi 0, %s91
      %s94 = sphi 0, %s93
      %s108 = sphi 0, %s94
      %s112 = sphi 0, %s112
      %s114 = sphi 0, %s112
      %s115 = sphi 0, %s114
      %s129 = sphi 0, %s115
      %s135 = sphi 0, %s137
      %s138 = sphi 0, %s135
      %s139 = sphi 0, %s138
      %s155 = sphi 0, %s139
      %s161 = sphi 0, %s163
      %s164 = sphi 0, %s161
      %s165 = sphi 0, %s164
      %s181 = sphi 0, %s165
    $region4: #{tpu_custom_call.1} parent=1 // loop_header_branch
      %25 = sbr.rel (%p23) target = $region8
    $region5: #{tpu_custom_call.1} parent=1 // loop_body
      %s27 = ssub.s32 %s22, 1
      %s28 = ssub.s32 %s22, 2
      %s35 = sadd.s32 1, %s30
      %p36 = scmp.ge.s32.totalorder %s35, 1
      %s37 = scalar_select %p36, 0, %s35
      %s38 = sadd.s32 1, %s29
      %s39 = scalar_select %p36, %s38, %s29
      %p40 = scmp.ge.s32.totalorder %s39, 2
      %s41 = scalar_select %p40, 0, %s39
      %s42 = ssub.s32 %s29, %s41
      %s43 = ssub.s32 %s30, %s37
      %s44 = sor.u32 %s42, %s43
      %p45 = scmp.eq.s32.totalorder %s44, 0
      %s47 = sadd.s32 %s46, 1
      %s48 = scalar_select %p45, %s46, %s47
      %p51 = pneg %p45
      %p52 = scmp.eq.s32.totalorder %s22, 1
      %p53 = por %p51, %p52
      %p54 = scmp.ne.s32.totalorder %s46, %s49
      %p55 = scmp.eq.s32.totalorder %s22, 0
      %p56 = por %p54, %p55
      %p57 = scmp.ne.s32.totalorder %s46, %s49
      %p58 = scmp.eq.s32.totalorder %s27, 1
      %p59 = por %p57, %p58
      %p60 = scmp.ne.s32.totalorder %s49, %s50
      %p61 = scmp.eq.s32.totalorder %s27, 0
      %p62 = por %p60, %p61
      %p63 = scmp.ne.s32.totalorder %s49, %s50
      %p64 = scmp.eq.s32.totalorder %s28, 1
      %p65 = por %p63, %p64
      %p67 = scmp.ne.s32.totalorder %s50, %s66
      %p68 = scmp.eq.s32.totalorder %s28, 0
      %p69 = por %p67, %p68
      %s71 = sadd.s32 %s70, 1
      %p74 = scmp.eq.s32.totalorder %s22, 1
      %p75 = scmp.ne.s32.totalorder %s70, %s72
      %p76 = scmp.eq.s32.totalorder %s22, 0
      %p77 = por %p75, %p76
      %p78 = scmp.ne.s32.totalorder %s70, %s72
      %p79 = scmp.eq.s32.totalorder %s27, 1
      %p80 = por %p78, %p79
      %p81 = scmp.ne.s32.totalorder %s72, %s73
      %p82 = scmp.eq.s32.totalorder %s27, 0
      %p83 = por %p81, %p82
      %p84 = scmp.ne.s32.totalorder %s72, %s73
      %p85 = scmp.eq.s32.totalorder %s28, 1
      %p86 = por %p84, %p85
      %p88 = scmp.ne.s32.totalorder %s73, %s87
      %p89 = scmp.eq.s32.totalorder %s28, 0
      %p90 = por %p88, %p89
      %s92 = sadd.s32 %s91, 1
      %p95 = scmp.eq.s32.totalorder %s22, 1
      %p96 = scmp.ne.s32.totalorder %s91, %s93
      %p97 = scmp.eq.s32.totalorder %s22, 0
      %p98 = por %p96, %p97
      %p99 = scmp.ne.s32.totalorder %s91, %s93
      %p100 = scmp.eq.s32.totalorder %s27, 1
      %p101 = por %p99, %p100
      %p102 = scmp.ne.s32.totalorder %s93, %s94
      %p103 = scmp.eq.s32.totalorder %s27, 0
      %p104 = por %p102, %p103
      %p105 = scmp.ne.s32.totalorder %s93, %s94
      %p106 = scmp.eq.s32.totalorder %s28, 1
      %p107 = por %p105, %p106
      %p109 = scmp.ne.s32.totalorder %s94, %s108
      %p110 = scmp.eq.s32.totalorder %s28, 0
      %p111 = por %p109, %p110
      %s113 = sadd.s32 %s112, 1
      %p116 = scmp.eq.s32.totalorder %s22, 1
      %p117 = scmp.ne.s32.totalorder %s112, %s114
      %p118 = scmp.eq.s32.totalorder %s22, 0
      %p119 = por %p117, %p118
      %p120 = scmp.ne.s32.totalorder %s112, %s114
      %p121 = scmp.eq.s32.totalorder %s27, 1
      %p122 = por %p120, %p121
      %p123 = scmp.ne.s32.totalorder %s114, %s115
      %p124 = scmp.eq.s32.totalorder %s27, 0
      %p125 = por %p123, %p124
      %p126 = scmp.ne.s32.totalorder %s114, %s115
      %p127 = scmp.eq.s32.totalorder %s28, 1
      %p128 = por %p126, %p127
      %p130 = scmp.ne.s32.totalorder %s115, %s129
      %p131 = scmp.eq.s32.totalorder %s28, 0
      %p132 = por %p130, %p131
      %s133 = ssub.s32 %s29, %s41
      %p134 = scmp.eq.s32.totalorder %s133, 0
      %s136 = sadd.s32 %s135, 1
      %s137 = scalar_select %p134, %s135, %s136
      %p140 = pneg %p134
      %p141 = scmp.eq.s32.totalorder %s22, 1
      %p142 = por %p140, %p141
      %p143 = scmp.ne.s32.totalorder %s135, %s138
      %p144 = scmp.eq.s32.totalorder %s22, 0
      %p145 = por %p143, %p144
      %p146 = scmp.ne.s32.totalorder %s135, %s138
      %p147 = scmp.eq.s32.totalorder %s27, 1
      %p148 = por %p146, %p147
      %p149 = scmp.ne.s32.totalorder %s138, %s139
      %p150 = scmp.eq.s32.totalorder %s27, 0
      %p151 = por %p149, %p150
      %p152 = scmp.ne.s32.totalorder %s138, %s139
      %p153 = scmp.eq.s32.totalorder %s28, 1
      %p154 = por %p152, %p153
      %p156 = scmp.ne.s32.totalorder %s139, %s155
      %p157 = scmp.eq.s32.totalorder %s28, 0
      %p158 = por %p156, %p157
      %s159 = ssub.s32 %s29, %s41
      %p160 = scmp.eq.s32.totalorder %s159, 0
      %s162 = sadd.s32 %s161, 1
      %s163 = scalar_select %p160, %s161, %s162
      %p166 = pneg %p160
      %p167 = scmp.eq.s32.totalorder %s22, 1
      %p168 = por %p166, %p167
      %p169 = scmp.ne.s32.totalorder %s161, %s164
      %p170 = scmp.eq.s32.totalorder %s22, 0
      %p171 = por %p169, %p170
      %p172 = scmp.ne.s32.totalorder %s161, %s164
      %p173 = scmp.eq.s32.totalorder %s27, 1
      %p174 = por %p172, %p173
      %p175 = scmp.ne.s32.totalorder %s164, %s165
      %p176 = scmp.eq.s32.totalorder %s27, 0
      %p177 = por %p175, %p176
      %p178 = scmp.ne.s32.totalorder %s164, %s165
      %p179 = scmp.eq.s32.totalorder %s28, 1
      %p180 = por %p178, %p179
      %p182 = scmp.ne.s32.totalorder %s165, %s181
      %p183 = scmp.eq.s32.totalorder %s28, 0
      %p184 = por %p182, %p183
      %p185 = scmp.le.s32.totalorder 1, %s22
      %p186 = scmp.lt.s32.totalorder %s22, 3
      %p187 = pnand %p185, %p186
      %p188 = pneg %p187
      // Predicated region
      $region9: #{tpu_custom_call.1} parent=5 // pred_check
        _
      $region10: #{tpu_custom_call.1} parent=5 // pred_check_branch
        %190 = sbr.rel (%p187) target = $region12
      $region11: #{tpu_custom_call.1} parent=5 // pred_region
        %s191 = ssub.s32 %s22, 1
        // Predicated region
        $region13: #{tpu_custom_call.1} parent=11 // pred_check
          %p192 = pneg %p83
        $region14: #{tpu_custom_call.1} parent=11 // pred_check_branch
          %194 = sbr.rel (%p192) target = $region16
        $region15: #{tpu_custom_call.1} parent=11 // pred_region
          %s196 = ssub.s32 256, 256
          %197 = vsyncadd [#allocation6], %s196
          %s198 = sshll.u32 [#allocation5], 4
          %s199 = int_to_ptr.vmem [resolvable:$true] %s198
          %204 = dma.hbm_to_vmem [thread:$0]  %s1, 256, %s199, [#allocation6], 64, 64, 4
        $region16: #{tpu_custom_call.1} parent=11 // pred_fallthru
          _
        // Predicated region
        $region17: #{tpu_custom_call.1} parent=11 // pred_check
          %p205 = pneg %p104
        $region18: #{tpu_custom_call.1} parent=11 // pred_check_branch
          %207 = sbr.rel (%p205) target = $region20
        $region19: #{tpu_custom_call.1} parent=11 // pred_region
          _
        $region20: #{tpu_custom_call.1} parent=11 // pred_fallthru
          _
        // Predicated region
        $region21: #{tpu_custom_call.1} parent=11 // pred_check
          %p208 = pneg %p125
        $region22: #{tpu_custom_call.1} parent=11 // pred_check_branch
          %210 = sbr.rel (%p208) target = $region24
        $region23: #{tpu_custom_call.1} parent=11 // pred_region
          _
        $region24: #{tpu_custom_call.1} parent=11 // pred_fallthru
          _
      $region12: #{tpu_custom_call.1} parent=5 // pred_fallthru
        _
      %p211 = scmp.lt.s32.totalorder %s22, 2
      // Predicated region
      $region25: #{tpu_custom_call.1} parent=5 // pred_check
        %p212 = pneg %p211
      $region26: #{tpu_custom_call.1} parent=5 // pred_check_branch
        %214 = sbr.rel (%p212) target = $region28
      $region27: #{tpu_custom_call.1} parent=5 // pred_region
        // Predicated region
        $region29: #{tpu_custom_call.1} parent=27 // pred_check
          %p215 = pneg %p56
        $region30: #{tpu_custom_call.1} parent=27 // pred_check_branch
          %217 = sbr.rel (%p215) target = $region32
        $region31: #{tpu_custom_call.1} parent=27 // pred_region
          %s218 = sand.u32 %s46, 1
          %s219 = scalar_lea.sflag [#allocation3], %s218
          %s220 = sand.u32 %s46, 1
          %s221 = smul.addr %s220, 4
          %s222 = scalar_lea.vmem [#allocation2], %s221
          %s224 = ssub.s32 64, 64
          %225 = vsyncadd %s219, %s224
          %s226 = sadd.s32 %s30, %s29
          %s227 = smul.addr %s226, 64
          %s228 = scalar_lea.hbm %s0, %s227
          %s230 = sshll.u32 %s222, 4
          %s231 = int_to_ptr.vmem [resolvable:$true] %s230
          %233 = dma.hbm_to_vmem [thread:$0]  %s228, 64, %s231, %s219
        $region32: #{tpu_custom_call.1} parent=27 // pred_fallthru
          _
      $region28: #{tpu_custom_call.1} parent=5 // pred_fallthru
        _
      %p234 = scmp.le.s32.totalorder 1, %s22
      %p235 = scmp.lt.s32.totalorder %s22, 3
      %p236 = pnand %p234, %p235
      %p237 = pneg %p236
      // Predicated region
      $region33: #{tpu_custom_call.1} parent=5 // pred_check
        _
      $region34: #{tpu_custom_call.1} parent=5 // pred_check_branch
        %239 = sbr.rel (%p236) target = $region36
      $region35: #{tpu_custom_call.1} parent=5 // pred_region
        %s240 = ssub.s32 %s22, 1
        %s241 = sand.u32 %s49, 1
        %s242 = scalar_lea.sflag [#allocation3], %s241
        %s243 = sand.u32 %s49, 1
        %s244 = smul.addr %s243, 4
        %s245 = scalar_lea.vmem [#allocation2], %s244
        // Predicated region
        $region37: #{tpu_custom_call.1} parent=35 // pred_check
          %p246 = pneg %p62
        $region38: #{tpu_custom_call.1} parent=35 // pred_check_branch
          %248 = sbr.rel (%p246) target = $region40
        $region39: #{tpu_custom_call.1} parent=35 // pred_region
          %249 = dma.done %s242, 64
        $region40: #{tpu_custom_call.1} parent=35 // pred_fallthru
          _
        // Predicated region
        $region41: #{tpu_custom_call.1} parent=35 // pred_check
          %p250 = pneg %p83
        $region42: #{tpu_custom_call.1} parent=35 // pred_check_branch
          %252 = sbr.rel (%p250) target = $region44
        $region43: #{tpu_custom_call.1} parent=35 // pred_region
          %253 = dma.done [#allocation6], 256
        $region44: #{tpu_custom_call.1} parent=35 // pred_fallthru
          _
        %s254 = sand.u32 %s49, 1
        %s255 = scalar_lea.sflag [#allocation3], %s254
        %s256 = sand.u32 %s49, 1
        %s257 = smul.addr %s256, 4
        %s258 = scalar_lea.vmem [#allocation2], %s257
        %p259 = pneg %p62
        %p260 = pneg %p59
        %p261 = pneg %p83
        %p262 = pneg %p80
        %p263 = pneg %p104
        %p264 = pneg %p101
        %p265 = pneg %p125
        %p266 = pneg %p122
        %p267 = pneg %p151
        %p268 = pneg %p148
        %s269 = sand.u32 %s138, 1
        %s270 = scalar_lea.sflag [#allocation4], %s269
        %s271 = sand.u32 %s138, 1
        %s272 = scalar_lea.vmem [#allocation7], %s271
        %p273 = pneg %p177
        %p274 = pneg %p174
        %s275 = sand.u32 %s164, 1
        %s276 = scalar_lea.sflag [#allocation9], %s275
        %s277 = sand.u32 %s164, 1
        %s278 = smul.addr %s277, 32
        %s279 = scalar_lea.vmem [#allocation8], %s278
        %p281 = scmp.eq.s32.totalorder %s32, 0
        // Predicated region
        $region45: #{tpu_custom_call.1} parent=35 // pred_check
          %p282 = pneg %p281
        $region46: #{tpu_custom_call.1} parent=35 // pred_check_branch
          %284 = sbr.rel (%p282) target = $region48
        $region47: #{tpu_custom_call.1} parent=35 // pred_region
          %vm285 = vcmask 253952
          %286 = vst.msk [vmem:[%s272] sm:$0x1] %vm285, 0.0
          %vm287 = vcmask 261120
          %288 = vst.msk [vmem:[%s279] sm:$0xff] %vm287, 0.0
          %289 = vst.msk [vmem:[%s279 + $0x8] sm:$0xff] %vm287, 0.0
          %290 = vst.msk [vmem:[%s279 + $0x10] sm:$0xff] %vm287, 0.0
          %291 = vst.msk [vmem:[%s279 + $0x18] sm:$0xff] %vm287, 0.0
        $region48: #{tpu_custom_call.1} parent=35 // pred_fallthru
          _
        %v292 = vld [vmem:[%s245] sm:$0xf]
        %v293 = vld [vmem:[#allocation5] sm:$0xf]
        %v294 = vld [vmem:[#allocation5 + $0x4] sm:$0xf]
        %v295 = vld [vmem:[#allocation5 + $0x8] sm:$0xf]
        %v296 = vld [vmem:[#allocation5 + $0xc] sm:$0xf]
        %v297 = vld [vmem:[%s2] sm:$0x1]
        %v299 = vlaneseq
        %v300 = vshrl.u32 %v299, 7
        %v301 = vsub.s32 0, %v300
        %v302 = vrot.slane %v297, %v301
        %v308 = vunpack.c.l.b16 %v293
        %v309 = vunpack.c.l.b16 %v294
        %v310 = vunpack.c.l.b16 %v295
        %v311 = vunpack.c.l.b16 %v296
        %v312 = vpack.c.b16 %v309, %v308
        %v313 = vpack.c.b16 %v311, %v310
        %vm316 = vcmask 261120
        %v318 = vsel %vm316, %v292, 0
        %320 = vmatprep.subr.bf16.mxu0 0
        %321 = vmatpush1.bf16.msra.mxu0 %v312
        %322 = vmatprep.subr.bf16.mxu0 0
        %323 = vmatpush1.bf16.msra.mxu0 %v313
        %324 = vmatprep.subr.bf16.mxu0 0
        %325 = vmatpush1.bf16.msra.mxu0 0
        %326 = vmatprep.subr.bf16.mxu0 0
        %327 = vmatpush1.bf16.msra.mxu0 0
        %328 = vmatprep.subr.bf16.mxu0 0
        %329 = vmatpush1.bf16.msra.mxu0 0
        %330 = vmatprep.subr.bf16.mxu0 0
        %331 = vmatpush1.bf16.msra.mxu0 0
        %332 = vmatprep.subr.bf16.mxu0 0
        %333 = vmatpush1.bf16.msra.mxu0 0
        %334 = vmatprep.subr.bf16.mxu0 0
        %335 = vmatpush1.bf16.msra.mxu0 0
        %336 = vmatprep.subr.bf16.mxu0 0
        %337 = vmatpush1.bf16.msra.mxu0 0
        %338 = vmatprep.subr.bf16.mxu0 0
        %339 = vmatpush1.bf16.msra.mxu0 0
        %340 = vmatprep.subr.bf16.mxu0 0
        %341 = vmatpush1.bf16.msra.mxu0 0
        %342 = vmatprep.subr.bf16.mxu0 0
        %343 = vmatpush1.bf16.msra.mxu0 0
        %344 = vmatprep.subr.bf16.mxu0 0
        %345 = vmatpush1.bf16.msra.mxu0 0
        %346 = vmatprep.subr.bf16.mxu0 0
        %347 = vmatpush1.bf16.msra.mxu0 0
        %348 = vmatprep.subr.bf16.mxu0 0
        %349 = vmatpush1.bf16.msra.mxu0 0
        %350 = vmatprep.subr.bf16.mxu0 0
        %351 = vmatpush1.bf16.msra.mxu0 0
        %352 = vmatprep.mubr.bf16.mxu0 0
        %353 = vmatmul.mubr.bf16.gmra.mrb[0].mxu0 %v318
        %v354 = vpop.f32.mrb[0].mxu0
        %v355 = vadd.f32 %v302, %v354
        %v356 = vpop.f32.mrb[0].mxu0
        %v357 = vpop.f32.mrb[0].mxu0
        %v358 = vpop.f32.mrb[0].mxu0
        %359 = vdwg.mxu0
        %v360 = vld [vmem:[%s3] sm:$0x1]
        %v362 = vlaneseq
        %v363 = vshrl.u32 %v362, 7
        %v364 = vsub.s32 0, %v363
        %v365 = vrot.slane %v360, %v364
        %v367 = vadd.f32 %v355, %v365
        %v368 = vmax.f32 %v367, 0.0
        %v369 = vld [vmem:[%s272] sm:$0x1]
        %v370 = vsel %vm316, %v368, 0.0
        %v371 = vrot.slane %v370, 4
        %v372 = vadd.f32 %v370, %v371
        %v373 = vrot.slane %v372, 2
        %v374 = vadd.f32 %v372, %v373
        %v375 = vrot.slane %v374, 1
        %v376 = vadd.f32 %v374, %v375
        %v377 = vadd.f32 %v369, %v376
        %vm378 = vcmask 253952
        %379 = vst.msk [vmem:[%s272] sm:$0x1] %vm378, %v377
        %v380 = vld [vmem:[%s279] sm:$0xff]
        %v381 = vld [vmem:[%s279 + $0x8] sm:$0xff]
        %v382 = vld [vmem:[%s279 + $0x10] sm:$0xff]
        %v383 = vld [vmem:[%s279 + $0x18] sm:$0xff]
        %v384 = vpack.c.bf16 %v368, %v368
        %v385 = vpack.c.bf16 %v355, %v355
        %386 = vxpose.xlu0.c.b16.start [1/8] %v384, 128
        %387 = vxpose.xlu0.c.b16.cont [2/8] 0, 128
        %388 = vxpose.xlu0.c.b16.cont [3/8] 0, 128
        %389 = vxpose.xlu0.c.b16.cont [4/8] 0, 128
        %390 = vxpose.xlu0.c.b16.cont [5/8] 0, 128
        %391 = vxpose.xlu0.c.b16.cont [6/8] 0, 128
        %392 = vxpose.xlu0.c.b16.cont [7/8] 0, 128
        %393 = vxpose.xlu0.c.b16.end [8/8] 0, 128
        %v394 = vpop.trf.xlu0
        %v395 = vpop.trf.xlu0
        %v396 = vpop.trf.xlu0
        %v397 = vpop.trf.xlu0
        %v398 = vpop.trf.xlu0
        %v399 = vpop.trf.xlu0
        %v400 = vpop.trf.xlu0
        %v401 = vpop.trf.xlu0
        %403 = vrot.lane.b32.xlu0 %v385, 96
        %v404 = vpop.permute.xlu0 %403
        %vm405 = vcmask 64512
        %v407 = vsel %vm405, %v394, 0
        %v410 = vsel %vm405, %v395, 0
        %vm412 = vcmask 1043456
        %v414 = vsel %vm412, %v404, 0
        %416 = vmatprep.subr.bf16.mxu0 0
        %417 = vmatpush1.bf16.msra.mxu0 %v414
        %418 = vmatprep.subr.bf16.mxu0 0
        %419 = vmatpush1.bf16.msra.mxu0 0
        %420 = vmatprep.subr.bf16.mxu0 0
        %421 = vmatpush1.bf16.msra.mxu0 0
        %422 = vmatprep.subr.bf16.mxu0 0
        %423 = vmatpush1.bf16.msra.mxu0 0
        %424 = vmatprep.subr.bf16.mxu0 0
        %425 = vmatpush1.bf16.msra.mxu0 0
        %426 = vmatprep.subr.bf16.mxu0 0
        %427 = vmatpush1.bf16.msra.mxu0 0
        %428 = vmatprep.subr.bf16.mxu0 0
        %429 = vmatpush1.bf16.msra.mxu0 0
        %430 = vmatprep.subr.bf16.mxu0 0
        %431 = vmatpush1.bf16.msra.mxu0 0
        %432 = vmatprep.subr.bf16.mxu0 0
        %433 = vmatpush1.bf16.msra.mxu0 0
        %434 = vmatprep.subr.bf16.mxu0 0
        %435 = vmatpush1.bf16.msra.mxu0 0
        %436 = vmatprep.subr.bf16.mxu0 0
        %437 = vmatpush1.bf16.msra.mxu0 0
        %438 = vmatprep.subr.bf16.mxu0 0
        %439 = vmatpush1.bf16.msra.mxu0 0
        %440 = vmatprep.subr.bf16.mxu0 0
        %441 = vmatpush1.bf16.msra.mxu0 0
        %442 = vmatprep.subr.bf16.mxu0 0
        %443 = vmatpush1.bf16.msra.mxu0 0
        %444 = vmatprep.subr.bf16.mxu0 0
        %445 = vmatpush1.bf16.msra.mxu0 0
        %446 = vmatprep.subr.bf16.mxu0 0
        %447 = vmatpush1.bf16.msra.mxu0 0
        %448 = vmatprep.mubr.bf16.mxu0 0
        %449 = vmatmul.mubr.bf16.gmra.mrb[0].mxu0 %v407
        %v450 = vpop.f32.mrb[0].mxu0
        %v451 = vadd.f32 0.0, %v450
        %v452 = vpop.f32.mrb[0].mxu0
        %v453 = vpop.f32.mrb[0].mxu0
        %v454 = vadd.f32 0.0, %v453
        %v455 = vpop.f32.mrb[0].mxu0
        %456 = vmatprep.mubr.bf16.mxu0 0
        %457 = vmatmul.mubr.bf16.gmra.mrb[0].mxu0 %v410
        %v458 = vpop.f32.mrb[0].mxu0
        %v459 = vadd.f32 0.0, %v458
        %v460 = vpop.f32.mrb[0].mxu0
        %v461 = vpop.f32.mrb[0].mxu0
        %v462 = vadd.f32 0.0, %v461
        %v463 = vpop.f32.mrb[0].mxu0
        %464 = vdwg.mxu0
        %v465 = vadd.f32 %v380, %v451
        %v466 = vadd.f32 %v381, %v454
        %v467 = vadd.f32 %v382, %v459
        %v468 = vadd.f32 %v383, %v462
        %469 = vst.msk [vmem:[%s279] sm:$0xff] %vm316, %v465
        %470 = vst.msk [vmem:[%s279 + $0x8] sm:$0xff] %vm316, %v466
        %471 = vst.msk [vmem:[%s279 + $0x10] sm:$0xff] %vm316, %v467
        %472 = vst.msk [vmem:[%s279 + $0x18] sm:$0xff] %vm316, %v468
        %s473 = sand.u32 %s138, 1
        %s474 = scalar_lea.sflag [#allocation4], %s473
        %s475 = sand.u32 %s138, 1
        %s476 = scalar_lea.vmem [#allocation7], %s475
        %s477 = sand.u32 %s164, 1
        %s478 = scalar_lea.sflag [#allocation9], %s477
        %s479 = sand.u32 %s164, 1
        %s480 = smul.addr %s479, 32
        %s481 = scalar_lea.vmem [#allocation8], %s480
        // Predicated region
        $region49: #{tpu_custom_call.1} parent=35 // pred_check
          %p482 = pneg %p148
        $region50: #{tpu_custom_call.1} parent=35 // pred_check_branch
          %484 = sbr.rel (%p482) target = $region52
        $region51: #{tpu_custom_call.1} parent=35 // pred_region
          %s486 = ssub.s32 16, 16
          %487 = vsyncadd %s474, %s486
          %s488 = smul.addr %s31, 16
          %s489 = scalar_lea.hbm %s4, %s488
          %s491 = sshll.u32 %s476, 4
          %s492 = int_to_ptr.vmem [resolvable:$true] %s491
          %494 = dma.vmem_to_hbm [thread:$0]  %s492, 16, %s489, %s474
        $region52: #{tpu_custom_call.1} parent=35 // pred_fallthru
          _
        // Predicated region
        $region53: #{tpu_custom_call.1} parent=35 // pred_check
          %p495 = pneg %p174
        $region54: #{tpu_custom_call.1} parent=35 // pred_check_branch
          %497 = sbr.rel (%p495) target = $region56
        $region55: #{tpu_custom_call.1} parent=35 // pred_region
          %s499 = ssub.s32 512, 512
          %500 = vsyncadd %s478, %s499
          %s501 = smul.addr %s31, 4
          %s502 = smul.addr %s501, 128
          %s503 = scalar_lea.hbm %s5, %s502
          %s504 = sshll.u32 %s481, 4
          %s505 = int_to_ptr.vmem [resolvable:$true] %s504
          %510 = dma.vmem_to_hbm [thread:$0]  %s505, 512, %s503, %s478, 128, 128, 8
        $region56: #{tpu_custom_call.1} parent=35 // pred_fallthru
          _
      $region36: #{tpu_custom_call.1} parent=5 // pred_fallthru
        _
      %p511 = scmp.le.s32.totalorder 2, %s22
      // Predicated region
      $region57: #{tpu_custom_call.1} parent=5 // pred_check
        %p512 = pneg %p511
      $region58: #{tpu_custom_call.1} parent=5 // pred_check_branch
        %514 = sbr.rel (%p512) target = $region60
      $region59: #{tpu_custom_call.1} parent=5 // pred_region
        %s515 = ssub.s32 %s22, 2
        // Predicated region
        $region61: #{tpu_custom_call.1} parent=59 // pred_check
          %p516 = pneg %p154
        $region62: #{tpu_custom_call.1} parent=59 // pred_check_branch
          %518 = sbr.rel (%p516) target = $region64
        $region63: #{tpu_custom_call.1} parent=59 // pred_region
          %s519 = sand.u32 %s139, 1
          %s520 = scalar_lea.sflag [#allocation4], %s519
          %s521 = sand.u32 %s139, 1
          %s522 = scalar_lea.vmem [#allocation7], %s521
          %523 = dma.done %s520, 16
        $region64: #{tpu_custom_call.1} parent=59 // pred_fallthru
          _
        // Predicated region
        $region65: #{tpu_custom_call.1} parent=59 // pred_check
          %p524 = pneg %p180
        $region66: #{tpu_custom_call.1} parent=59 // pred_check_branch
          %526 = sbr.rel (%p524) target = $region68
        $region67: #{tpu_custom_call.1} parent=59 // pred_region
          %s527 = sand.u32 %s165, 1
          %s528 = scalar_lea.sflag [#allocation9], %s527
          %s529 = sand.u32 %s165, 1
          %s530 = smul.addr %s529, 32
          %s531 = scalar_lea.vmem [#allocation8], %s530
          %532 = dma.done %s528, 512
        $region68: #{tpu_custom_call.1} parent=59 // pred_fallthru
          _
      $region60: #{tpu_custom_call.1} parent=5 // pred_fallthru
        _
    $region6: #{tpu_custom_call.1} parent=1 // loop_footer
      %s26 = sadd.s32 1, %s22
    $region7: #{tpu_custom_call.1} parent=1 // loop_footer_branch
      %21 = sbr.rel target = $region3
    $region8: #{tpu_custom_call.1} parent=1 // loop_exit
      _
    %533 = vsyncpa [#allocation3], 1
    %s534 = scalar_lea.sflag [#allocation3], 1
    %535 = vsyncpa %s534, 1
    %536 = vsyncpa [#allocation6], 1
    %537 = vsyncpa [#allocation4], 1
    %s538 = scalar_lea.sflag [#allocation4], 1
    %539 = vsyncpa %s538, 1
    %540 = vsyncpa [#allocation9], 1
    %s541 = scalar_lea.sflag [#allocation9], 1
    %542 = vsyncpa %s541, 1

</llo_original>
